<compile_context>
chip_gen: v7x
topology: tpu7x:2x2x1
jax: 0.10.0
libtpu: 0.0.40
codegen_flags: <defaults>
</compile_context>

<pallas_src>
import jax
import jax.numpy as jnp
from jax import lax
from jax.experimental import pallas as pl
from jax.experimental.pallas import tpu as pltpu

MIN_DEPTH = 0.1
MAX_DEPTH = 100.0
NUM_CH_ENC = [64, 64, 128, 256, 512]
SCALES = tuple(range(4))

_C_UP = 64    # upconv hidden / output channels
_C_D1 = 128   # dispconv hidden channels
_C_D2 = 8     # dispconv output channels after zero-padding (channel 0 is real)


# ----------------------------------------------------------------------------
# Fused per-level Pallas kernel
# ----------------------------------------------------------------------------
def _make_level_kernel(nb, H, W, n_parts, cin, has_disp, min_d, max_d):
    Wp = W + 2

    def kernel(*refs):
        idx = 0
        part_refs = refs[idx:idx + n_parts]; idx += n_parts
        w1_ref, b1_ref, w2_ref, b2_ref = refs[idx:idx + 4]; idx += 4
        if has_disp:
            wd1_ref, bd1_ref, wd2_ref, bd2_ref = refs[idx:idx + 4]; idx += 4
        up_ref = refs[idx]; idx += 1
        depth_ref = None
        if has_disp:
            depth_ref = refs[idx]; idx += 1
        xpad_ref = refs[idx]; idx += 1
        h1pad_ref = refs[idx]; idx += 1
        h2pad_ref = refs[idx] if has_disp else None

        def store_padded(dst_ref, val, c):
            # Zero only the top/bottom border rows; the left/right zero
            # columns are folded into the interior store so every ref store is
            # full-width (no masked 1-column stores, no whole-buffer memset).
            dst_ref[:, 0:1, :, :] = jnp.zeros((nb, 1, Wp, c), dst_ref.dtype)
            dst_ref[:, H + 1:H + 2, :, :] = jnp.zeros((nb, 1, Wp, c),
                                                      dst_ref.dtype)
            zcol = jnp.zeros((nb, H, 1, c), dst_ref.dtype)
            dst_ref[:, 1:H + 1, :, :] = jnp.concatenate(
                [zcol, val.astype(dst_ref.dtype), zcol], axis=2)

        # ---- channel-concat of the (resized) parts, zero-padded, in VMEM ----
        if n_parts > 1:
            x = jnp.concatenate([p[...] for p in part_refs], axis=-1)
        else:
            x = part_refs[0][...]
        store_padded(xpad_ref, x, cin)

        # ---- first 3x3 convs (upconv_i_0 and dispconv conv1 share the input
        # block reads): one matmul per ky row-window on the contiguous
        # full-width block, kx taps stacked along N, shift-and-add done in the
        # small output-channel space. ----
        acc_up = jnp.zeros((nb, H, W, _C_UP), jnp.float32)
        acc_d = jnp.zeros((nb, H, W, _C_D1), jnp.float32) if has_disp else None
        for ky in range(3):
            blk = xpad_ref[:, ky:ky + H, :, :].reshape(nb * H * Wp, cin)
            y_up = jnp.dot(blk, w1_ref[ky], preferred_element_type=jnp.float32)
            y_up = y_up.reshape(nb, H, Wp, 3 * _C_UP)
            if has_disp:
                y_d = jnp.dot(blk, wd1_ref[ky],
                              preferred_element_type=jnp.float32)
                y_d = y_d.reshape(nb, H, Wp, 3 * _C_D1)
            for kx in range(3):
                acc_up = acc_up + y_up[:, :, kx:kx + W,
                                       kx * _C_UP:(kx + 1) * _C_UP]
                if has_disp:
                    acc_d = acc_d + y_d[:, :, kx:kx + W,
                                        kx * _C_D1:(kx + 1) * _C_D1]

        def conv3x3_im2col(src_ref, cmid, w_ref):
            # Second conv of each pair: fold the 9 taps into one K=9*cmid dot.
            taps = []
            for ky in range(3):
                for kx in range(3):
                    taps.append(src_ref[:, ky:ky + H, kx:kx + W, :])
            col = jnp.concatenate(taps, axis=-1).reshape(nb * H * W, 9 * cmid)
            return jnp.dot(col, w_ref[...], preferred_element_type=jnp.float32)

        # ---- upconv pair epilogue ----
        h1 = jnp.maximum(acc_up + b1_ref[...].reshape(1, 1, 1, _C_UP), 0.0)
        store_padded(h1pad_ref, h1, _C_UP)
        up = jnp.maximum(conv3x3_im2col(h1pad_ref, _C_UP, w2_ref)
                         + b2_ref[...], 0.0)
        up_ref[...] = up.reshape(nb, H, W, _C_UP).astype(up_ref.dtype)

        if has_disp:
            # ---- dispconv pair: ReLU -> conv -> stable sigmoid -> depth ----
            g1 = jnp.maximum(acc_d + bd1_ref[...].reshape(1, 1, 1, _C_D1), 0.0)
            store_padded(h2pad_ref, g1, _C_D1)
            d2 = conv3x3_im2col(h2pad_ref, _C_D1, wd2_ref) + bd2_ref[...]
            z = jnp.exp(-jnp.abs(d2))
            sig = jnp.where(d2 >= 0.0, 1.0 / (1.0 + z), z / (1.0 + z))
            depth = min_d + (max_d - min_d) * sig
            depth_ref[...] = depth.reshape(nb, H, W, _C_D2).astype(
                depth_ref.dtype)

    return kernel


def fused_level_call(parts, lp, has_disp, min_d, max_d):
    """One pallas_call per pyramid level.

    parts: list of NHWC bf16 tensors (already resized to this level's size);
    their channel-concat is the upconv input, and its prefix (all but the last
    skip part) is the dispconv input (handled via zero-padded dispconv
    weights).  Returns (upconv_out bf16 NHWC, depth f32 NHWC[...,8] or None).
    """
    parts = [p.astype(jnp.bfloat16) for p in parts]
    B, H, W, _ = parts[0].shape
    part_ch = tuple(int(p.shape[-1]) for p in parts)
    cin = sum(part_ch)
    assert cin == lp['up1_w'].shape[1], (cin, lp['up1_w'].shape)

    # Collapse the batch into the block at tiny levels (bigger matmul M, one
    # grid step); keep grid=(B,) "parallel" at large levels so both v7x
    # TensorCores get a batch element.
    collapse = (H * W) <= 64
    nb, grid = (B, (1,)) if collapse else (1, (B,))

    kern = _make_level_kernel(nb, H, W, len(parts), cin, has_disp,
                              float(min_d), float(max_d))

    batch_map = lambda b: (b, 0, 0, 0)
    w3_map = lambda b: (0, 0, 0)
    w2_map = lambda b: (0, 0)

    in_specs = [pl.BlockSpec((nb, H, W, c), batch_map) for c in part_ch]
    operands = list(parts)
    in_specs += [
        pl.BlockSpec(lp['up1_w'].shape, w3_map),
        pl.BlockSpec(lp['up1_b'].shape, w2_map),
        pl.BlockSpec(lp['up2_w'].shape, w2_map),
        pl.BlockSpec(lp['up2_b'].shape, w2_map),
    ]
    operands += [lp['up1_w'], lp['up1_b'], lp['up2_w'], lp['up2_b']]
    if has_disp:
        in_specs += [
            pl.BlockSpec(lp['dsp1_w'].shape, w3_map),
            pl.BlockSpec(lp['dsp1_b'].shape, w2_map),
            pl.BlockSpec(lp['dsp2_w'].shape, w2_map),
            pl.BlockSpec(lp['dsp2_b'].shape, w2_map),
        ]
        operands += [lp['dsp1_w'], lp['dsp1_b'], lp['dsp2_w'], lp['dsp2_b']]

    out_shapes = [jax.ShapeDtypeStruct((B, H, W, _C_UP), jnp.bfloat16)]
    out_specs = [pl.BlockSpec((nb, H, W, _C_UP), batch_map)]
    if has_disp:
        out_shapes.append(jax.ShapeDtypeStruct((B, H, W, _C_D2), jnp.float32))
        out_specs.append(pl.BlockSpec((nb, H, W, _C_D2), batch_map))

    scratch = [pltpu.VMEM((nb, H + 2, W + 2, cin), jnp.bfloat16),
               pltpu.VMEM((nb, H + 2, W + 2, _C_UP), jnp.bfloat16)]
    if has_disp:
        scratch.append(pltpu.VMEM((nb, H + 2, W + 2, _C_D1), jnp.bfloat16))

    outs = pl.pallas_call(
        kern,
        out_shape=tuple(out_shapes),
        grid=grid,
        in_specs=in_specs,
        out_specs=tuple(out_specs),
        scratch_shapes=scratch,
        compiler_params=pltpu.CompilerParams(
            dimension_semantics=("parallel",),
            vmem_limit_bytes=48 * 1024 * 1024),
    )(*operands)
    if has_disp:
        up, depth = outs
    else:
        (up,) = outs
        depth = None
    return up, depth


# ----------------------------------------------------------------------------
# Bilinear resize with align_corners=True (exact PyTorch semantics), NHWC,
# as two small separable 1-D interpolation matmuls.  Plain-JAX glue.
# ----------------------------------------------------------------------------
def _lin_interp_matrix(out_size, in_size):
    scale = (in_size - 1) / (out_size - 1) if out_size > 1 else 0.0
    coords = jnp.arange(out_size, dtype=jnp.float32) * scale
    i0 = jnp.clip(jnp.floor(coords), 0, in_size - 1).astype(jnp.int32)
    i1 = jnp.minimum(i0 + 1, in_size - 1)
    w1 = coords - i0.astype(jnp.float32)
    w0 = 1.0 - w1
    m = (w0[:, None] * jax.nn.one_hot(i0, in_size, dtype=jnp.float32)
         + w1[:, None] * jax.nn.one_hot(i1, in_size, dtype=jnp.float32))
    return m  # (out, in)


def bilinear_resize_nhwc(x, size):  # x: NHWC
    Hout, Wout = int(size[0]), int(size[1])
    B, Hin, Win, C = x.shape
    if (Hin, Win) == (Hout, Wout):
        return x
    Mh = _lin_interp_matrix(Hout, Hin)
    Mw = _lin_interp_matrix(Wout, Win)
    y = jnp.einsum('oh,bhwc->bowc', Mh, x.astype(jnp.float32))
    y = jnp.einsum('pw,bowc->bopc', Mw, y)
    return y.astype(x.dtype)


# ----------------------------------------------------------------------------
# Deterministic parameters: conv weights with eval-mode BN scale folded in
# (bf16), biases in f32, packed into the kernel's matmul-friendly layouts.
# ----------------------------------------------------------------------------
def make_params(key, num_ch_enc=NUM_CH_ENC, scales=SCALES):
    keys = iter(jax.random.split(key, 128))

    def conv_w(cin, cout):
        std = (2.0 / (cin * 9)) ** 0.5
        return jax.random.normal(next(keys), (3, 3, cin, cout),
                                 jnp.float32) * std

    def conv_b(cout):
        return jax.random.normal(next(keys), (cout,), jnp.float32) * 0.05

    def bn_fold(conv_bias, cout, eps=1e-5):
        gamma = jax.random.uniform(next(keys), (cout,), jnp.float32, 0.5, 1.5)
        beta = jax.random.normal(next(keys), (cout,), jnp.float32) * 0.05
        mean = jax.random.normal(next(keys), (cout,), jnp.float32) * 0.05
        var = jax.random.uniform(next(keys), (cout,), jnp.float32, 0.5, 1.5)
        s = gamma / jnp.sqrt(var + eps)
        b = conv_bias * s + beta - mean * s
        return s, b

    def pack_ky(w):             # (3,3,cin,cout) -> (3, cin, 3*cout) bf16
        _, _, ci, co = w.shape
        return jnp.transpose(w, (0, 2, 1, 3)).reshape(3, ci, 3 * co).astype(
            jnp.bfloat16)

    def pack_im2col(w):         # (3,3,cmid,cout) -> (9*cmid, cout) bf16
        _, _, ci, co = w.shape
        return w.reshape(9 * ci, co).astype(jnp.bfloat16)

    params = {}
    dense_channels = [num_ch_enc[4]]
    for i in range(4, -1, -1):
        if i < 4:
            cin = sum(dense_channels)
            if i > 0:
                cin += num_ch_enc[i - 1]
        else:
            cin = num_ch_enc[4]
        level = {}
        w = conv_w(cin, _C_UP)
        s, b = bn_fold(conv_b(_C_UP), _C_UP)
        level['up1_w'] = pack_ky(w * s)
        level['up1_b'] = b.reshape(1, _C_UP).astype(jnp.float32)
        w = conv_w(_C_UP, _C_UP)
        s, b = bn_fold(conv_b(_C_UP), _C_UP)
        level['up2_w'] = pack_im2col(w * s)
        level['up2_b'] = b.reshape(1, _C_UP).astype(jnp.float32)
        params[f'level_{i}'] = level
        dense_channels.append(_C_UP)

    for i in scales:
        level = params[f'level_{i}']
        cin_up = level['up1_w'].shape[1]
        cin_d = sum(dense_channels[:5 - i])
        # dispconv conv1: real input is the channel prefix of the upconv
        # input; zero-pad Cin up to cin_up so it can share the same VMEM tile.
        w = conv_w(cin_d, _C_D1)
        w = jnp.concatenate(
            [w, jnp.zeros((3, 3, cin_up - cin_d, _C_D1), jnp.float32)], axis=2)
        level['dsp1_w'] = pack_ky(w)
        level['dsp1_b'] = conv_b(_C_D1).reshape(1, _C_D1)
        # dispconv conv2: 128 -> 1, Cout zero-padded to 8 (channel 0 real).
        w = conv_w(_C_D1, 1)
        b = conv_b(1)
        w = jnp.concatenate(
            [w, jnp.zeros((3, 3, _C_D1, _C_D2 - 1), jnp.float32)], axis=3)
        level['dsp2_w'] = pack_im2col(w)
        level['dsp2_b'] = jnp.concatenate(
            [b, jnp.zeros((_C_D2 - 1,), jnp.float32)]).reshape(1, _C_D2)
    return params


# ----------------------------------------------------------------------------
# Pure-JAX reference (lax.conv) for correctness spot-checks.
# ----------------------------------------------------------------------------
def _unpack_ky(w_packed):
    _, cin, c3 = w_packed.shape
    cout = c3 // 3
    w = w_packed.astype(jnp.float32).reshape(3, cin, 3, cout)
    return jnp.transpose(w, (0, 2, 1, 3))            # HWIO


def _unpack_im2col(w_packed):
    k9c, cout = w_packed.shape
    return w_packed.astype(jnp.float32).reshape(3, 3, k9c // 9, cout)


def _ref_conv3x3(x, w_hwio, b):
    y = lax.conv_general_dilated(x, w_hwio, (1, 1), 'SAME',
                                 dimension_numbers=('NHWC', 'HWIO', 'NHWC'))
    return y + b.reshape(1, 1, 1, -1)


def _ref_level(parts, lp, has_disp, min_d, max_d):
    x = jnp.concatenate([p.astype(jnp.float32) for p in parts], axis=-1)
    h = jnp.maximum(_ref_conv3x3(x, _unpack_ky(lp['up1_w']),
                                 lp['up1_b'][0]), 0.0)
    h = h.astype(jnp.bfloat16).astype(jnp.float32)
    up = jnp.maximum(_ref_conv3x3(h, _unpack_im2col(lp['up2_w']),
                                  lp['up2_b'][0]), 0.0)
    depth = None
    if has_disp:
        g = jnp.maximum(_ref_conv3x3(x, _unpack_ky(lp['dsp1_w']),
                                     lp['dsp1_b'][0]), 0.0)
        g = g.astype(jnp.bfloat16).astype(jnp.float32)
        d = _ref_conv3x3(g, _unpack_im2col(lp['dsp2_w']), lp['dsp2_b'][0])
        depth = min_d + (max_d - min_d) * jax.nn.sigmoid(d)
    return up, depth


# ----------------------------------------------------------------------------
# Forward pass mirroring DepthDecoder.forward (NHWC internally)
# ----------------------------------------------------------------------------
def depth_decoder_forward(params, input_features, scales=SCALES,
                          min_depth=MIN_DEPTH, max_depth=MAX_DEPTH):
    # Single layout change at the module boundary: NCHW -> NHWC, bf16.
    feats = [jnp.transpose(f, (0, 2, 3, 1)).astype(jnp.bfloat16)
             for f in input_features]
    outputs = {}
    dense_features = [feats[4]]
    for i in range(4, -1, -1):
        if i == 4:
            parts = [feats[4]]
        else:
            size_i = feats[i].shape[1:3]
            parts = [bilinear_resize_nhwc(f, size_i) for f in dense_features]
            if i > 0:
                parts.append(bilinear_resize_nhwc(feats[i - 1], size_i))
        has_disp = i in scales
        up, depth = fused_level_call(parts, params[f'level_{i}'], has_disp,
                                     min_depth, max_depth)
        dense_features.append(up)
        if has_disp:
            outputs[('depth', i)] = jnp.transpose(depth[..., 0:1],
                                                  (0, 3, 1, 2))   # NCHW f32
    return outputs


# ----------------------------------------------------------------------------
if __name__ == "__main__":
    key = jax.random.PRNGKey(0)
    kp, kf, kc = jax.random.split(key, 3)
    params = make_params(kp)

    B = 2
    spatial = [32, 16, 8, 4, 2]   # encoder pyramid (level 4 = deepest/smallest)
    feat_keys = jax.random.split(kf, 5)
    input_features = [
        jax.random.normal(feat_keys[i],
                          (B, NUM_CH_ENC[i], spatial[i], spatial[i]),
                          jnp.float32)
        for i in range(5)
    ]

    # ---- correctness spot-checks: fused Pallas level vs lax.conv reference ----
    def check_level(i, part_ch, hw, ck):
        lp = params[f'level_{i}']
        ks = jax.random.split(ck, len(part_ch))
        parts = [jax.random.normal(ks[j], (B, hw, hw, c),
                                   jnp.float32).astype(jnp.bfloat16)
                 for j, c in enumerate(part_ch)]
        has_disp = i in SCALES
        up, depth = fused_level_call(parts, lp, has_disp, MIN_DEPTH, MAX_DEPTH)
        up_ref, depth_ref = _ref_level(parts, lp, has_disp, MIN_DEPTH,
                                       MAX_DEPTH)
        up_ref = up_ref.astype(jnp.bfloat16).astype(jnp.float32)
        assert jnp.allclose(up.astype(jnp.float32), up_ref,
                            atol=0.1, rtol=0.1), \
            f"level {i}: fused upconv pair mismatch"
        if has_disp:
            assert jnp.allclose(depth[..., 0], depth_ref[..., 0],
                                atol=2.0, rtol=0.1), \
                f"level {i}: fused dispconv pair mismatch"

    check_level(4, [512], 2, jax.random.fold_in(kc, 4))        # collapsed batch
    check_level(1, [512, 64, 64, 64, 64], 16,
                jax.random.fold_in(kc, 1))                     # grid=(B,), disp

    fwd = jax.jit(depth_decoder_forward)
    outputs = fwd(params, input_features)
    for (name, i) in sorted(outputs.keys(), key=lambda k: k[1]):
        arr = jax.block_until_ready(outputs[(name, i)])
        exp_hw = tuple(input_features[i].shape[-2:])
        assert arr.shape == (B, 1) + exp_hw, (arr.shape, exp_hw)
        assert bool(jnp.all(jnp.isfinite(arr)))
        assert float(arr.min()) >= MIN_DEPTH - 1e-3
        assert float(arr.max()) <= MAX_DEPTH + 1e-3

    print("KERNEL_OK")
</pallas_src>

<mosaic_0001>
module attributes {stable_mosaic.version = 11 : i64} {
  func.func @kernel(%arg0: i32, %arg1: memref<2x2x2x512xbf16, #tpu.memory_space<vmem>>, %arg2: memref<3x512x192xbf16, #tpu.memory_space<vmem>>, %arg3: memref<1x64xf32, #tpu.memory_space<vmem>>, %arg4: memref<576x64xbf16, #tpu.memory_space<vmem>>, %arg5: memref<1x64xf32, #tpu.memory_space<vmem>>, %arg6: memref<2x2x2x64xbf16, #tpu.memory_space<vmem>>, %arg7: memref<2x4x4x512xbf16, #tpu.memory_space<vmem>>, %arg8: memref<2x4x4x64xbf16, #tpu.memory_space<vmem>>) attributes {dimension_semantics = [#tpu.dimension_semantics<parallel>], iteration_bounds = array<i64: 1>, scalar_prefetch = 0 : i64, scratch_operands = 2 : i64, tpu.core_type = #tpu.core_type<tc>, window_params = [{transform_indices = @transform_0, window_bounds = array<i64: 2, 2, 2, 512>}, {pipeline_mode = #tpu.pipeline_mode<synchronous>, transform_indices = @transform_1, window_bounds = array<i64: 3, 512, 192>}, {pipeline_mode = #tpu.pipeline_mode<synchronous>, transform_indices = @transform_2, window_bounds = array<i64: 1, 64>}, {pipeline_mode = #tpu.pipeline_mode<synchronous>, transform_indices = @transform_3, window_bounds = array<i64: 576, 64>}, {pipeline_mode = #tpu.pipeline_mode<synchronous>, transform_indices = @transform_4, window_bounds = array<i64: 1, 64>}, {transform_indices = @transform_5, window_bounds = array<i64: 2, 2, 2, 64>}]} {
    %c0 = arith.constant 0 : index
    %c0_0 = arith.constant 0 : index
    %c0_1 = arith.constant 0 : index
    %c0_2 = arith.constant 0 : index
    %0 = vector.load %arg1[%c0, %c0_0, %c0_1, %c0_2] : memref<2x2x2x512xbf16, #tpu.memory_space<vmem>>, vector<2x2x2x512xbf16>
    %cst = arith.constant 0.000000e+00 : bf16
    %1 = vector.broadcast %cst : bf16 to vector<2x1x4x512xbf16>
    %c0_3 = arith.constant 0 : index
    %c0_4 = arith.constant 0 : index
    %c0_5 = arith.constant 0 : index
    %c0_6 = arith.constant 0 : index
    %2 = vector.load %arg7[%c0_3, %c0_4, %c0_5, %c0_6] : memref<2x4x4x512xbf16, #tpu.memory_space<vmem>>, vector<2x1x4x512xbf16>
    tpu.vector_store %arg7[%c0_3, %c0_4, %c0_5, %c0_6], %1 {strides = array<i32>} : memref<2x4x4x512xbf16, #tpu.memory_space<vmem>>, vector<2x1x4x512xbf16>,
    %cst_7 = arith.constant 0.000000e+00 : bf16
    %3 = vector.broadcast %cst_7 : bf16 to vector<2x1x4x512xbf16>
    %c0_8 = arith.constant 0 : index
    %c3 = arith.constant 3 : index
    %c0_9 = arith.constant 0 : index
    %c0_10 = arith.constant 0 : index
    %4 = vector.load %arg7[%c0_8, %c3, %c0_9, %c0_10] : memref<2x4x4x512xbf16, #tpu.memory_space<vmem>>, vector<2x1x4x512xbf16>
    tpu.vector_store %arg7[%c0_8, %c3, %c0_9, %c0_10], %3 {strides = array<i32>} : memref<2x4x4x512xbf16, #tpu.memory_space<vmem>>, vector<2x1x4x512xbf16>,
    %cst_11 = arith.constant 0.000000e+00 : bf16
    %5 = vector.broadcast %cst_11 : bf16 to vector<2x2x1x512xbf16>
    %6 = tpu.concatenate %5, %0, %5 in 2 : vector<2x2x1x512xbf16>, vector<2x2x2x512xbf16>, vector<2x2x1x512xbf16> -> vector<2x2x4x512xbf16>
    %c0_12 = arith.constant 0 : index
    %c1 = arith.constant 1 : index
    %c0_13 = arith.constant 0 : index
    %c0_14 = arith.constant 0 : index
    %7 = vector.load %arg7[%c0_12, %c1, %c0_13, %c0_14] : memref<2x4x4x512xbf16, #tpu.memory_space<vmem>>, vector<2x2x4x512xbf16>
    tpu.vector_store %arg7[%c0_12, %c1, %c0_13, %c0_14], %6 {strides = array<i32>} : memref<2x4x4x512xbf16, #tpu.memory_space<vmem>>, vector<2x2x4x512xbf16>,
    %cst_15 = arith.constant 0.000000e+00 : f32
    %8 = vector.broadcast %cst_15 : f32 to vector<2x2x2x64xf32>
    %c0_16 = arith.constant 0 : index
    %c0_17 = arith.constant 0 : index
    %c0_18 = arith.constant 0 : index
    %c0_19 = arith.constant 0 : index
    %9 = vector.load %arg7[%c0_16, %c0_17, %c0_18, %c0_19] : memref<2x4x4x512xbf16, #tpu.memory_space<vmem>>, vector<2x2x4x512xbf16>
    %10 = vector.shape_cast %9 : vector<2x2x4x512xbf16> to vector<16x512xbf16>
    %c0_20 = arith.constant 0 : index
    %c0_21 = arith.constant 0 : index
    %c0_22 = arith.constant 0 : index
    %11 = vector.load %arg2[%c0_20, %c0_21, %c0_22] : memref<3x512x192xbf16, #tpu.memory_space<vmem>>, vector<1x512x192xbf16>
    %12 = vector.shape_cast %11 : vector<1x512x192xbf16> to vector<512x192xbf16>
    %cst_23 = arith.constant dense<0.000000e+00> : vector<16x192xf32>
    %13 = tpu.matmul %10, %12, %cst_23 {dimension_numbers = #tpu.dot_dimension_numbers<[1], [0], [0], [1], [0, 0, 1, 1], [], []>} : vector<16x512xbf16>, vector<512x192xbf16>, vector<16x192xf32> -> vector<16x192xf32>
    %14 = vector.shape_cast %13 : vector<16x192xf32> to vector<2x2x4x192xf32>
    %15 = vector.extract_strided_slice %14 {offsets = [0, 0, 0, 0], sizes = [2, 2, 2, 64], strides = [1, 1, 1, 1]} : vector<2x2x4x192xf32> to vector<2x2x2x64xf32>
    %16 = arith.addf %8, %15 : vector<2x2x2x64xf32>
    %17 = vector.extract_strided_slice %14 {offsets = [0, 0, 1, 64], sizes = [2, 2, 2, 64], strides = [1, 1, 1, 1]} : vector<2x2x4x192xf32> to vector<2x2x2x64xf32>
    %18 = arith.addf %16, %17 : vector<2x2x2x64xf32>
    %19 = vector.extract_strided_slice %14 {offsets = [0, 0, 2, 128], sizes = [2, 2, 2, 64], strides = [1, 1, 1, 1]} : vector<2x2x4x192xf32> to vector<2x2x2x64xf32>
    %20 = arith.addf %18, %19 : vector<2x2x2x64xf32>
    %c0_24 = arith.constant 0 : index
    %c1_25 = arith.constant 1 : index
    %c0_26 = arith.constant 0 : index
    %c0_27 = arith.constant 0 : index
    %21 = vector.load %arg7[%c0_24, %c1_25, %c0_26, %c0_27] : memref<2x4x4x512xbf16, #tpu.memory_space<vmem>>, vector<2x2x4x512xbf16>
    %22 = vector.shape_cast %21 : vector<2x2x4x512xbf16> to vector<16x512xbf16>
    %c1_28 = arith.constant 1 : index
    %c0_29 = arith.constant 0 : index
    %c0_30 = arith.constant 0 : index
    %23 = vector.load %arg2[%c1_28, %c0_29, %c0_30] : memref<3x512x192xbf16, #tpu.memory_space<vmem>>, vector<1x512x192xbf16>
    %24 = vector.shape_cast %23 : vector<1x512x192xbf16> to vector<512x192xbf16>
    %cst_31 = arith.constant dense<0.000000e+00> : vector<16x192xf32>
    %25 = tpu.matmul %22, %24, %cst_31 {dimension_numbers = #tpu.dot_dimension_numbers<[1], [0], [0], [1], [0, 0, 1, 1], [], []>} : vector<16x512xbf16>, vector<512x192xbf16>, vector<16x192xf32> -> vector<16x192xf32>
    %26 = vector.shape_cast %25 : vector<16x192xf32> to vector<2x2x4x192xf32>
    %27 = vector.extract_strided_slice %26 {offsets = [0, 0, 0, 0], sizes = [2, 2, 2, 64], strides = [1, 1, 1, 1]} : vector<2x2x4x192xf32> to vector<2x2x2x64xf32>
    %28 = arith.addf %20, %27 : vector<2x2x2x64xf32>
    %29 = vector.extract_strided_slice %26 {offsets = [0, 0, 1, 64], sizes = [2, 2, 2, 64], strides = [1, 1, 1, 1]} : vector<2x2x4x192xf32> to vector<2x2x2x64xf32>
    %30 = arith.addf %28, %29 : vector<2x2x2x64xf32>
    %31 = vector.extract_strided_slice %26 {offsets = [0, 0, 2, 128], sizes = [2, 2, 2, 64], strides = [1, 1, 1, 1]} : vector<2x2x4x192xf32> to vector<2x2x2x64xf32>
    %32 = arith.addf %30, %31 : vector<2x2x2x64xf32>
    %c0_32 = arith.constant 0 : index
    %c2 = arith.constant 2 : index
    %c0_33 = arith.constant 0 : index
    %c0_34 = arith.constant 0 : index
    %33 = vector.load %arg7[%c0_32, %c2, %c0_33, %c0_34] : memref<2x4x4x512xbf16, #tpu.memory_space<vmem>>, vector<2x2x4x512xbf16>
    %34 = vector.shape_cast %33 : vector<2x2x4x512xbf16> to vector<16x512xbf16>
    %c2_35 = arith.constant 2 : index
    %c0_36 = arith.constant 0 : index
    %c0_37 = arith.constant 0 : index
    %35 = vector.load %arg2[%c2_35, %c0_36, %c0_37] : memref<3x512x192xbf16, #tpu.memory_space<vmem>>, vector<1x512x192xbf16>
    %36 = vector.shape_cast %35 : vector<1x512x192xbf16> to vector<512x192xbf16>
    %cst_38 = arith.constant dense<0.000000e+00> : vector<16x192xf32>
    %37 = tpu.matmul %34, %36, %cst_38 {dimension_numbers = #tpu.dot_dimension_numbers<[1], [0], [0], [1], [0, 0, 1, 1], [], []>} : vector<16x512xbf16>, vector<512x192xbf16>, vector<16x192xf32> -> vector<16x192xf32>
    %38 = vector.shape_cast %37 : vector<16x192xf32> to vector<2x2x4x192xf32>
    %39 = vector.extract_strided_slice %38 {offsets = [0, 0, 0, 0], sizes = [2, 2, 2, 64], strides = [1, 1, 1, 1]} : vector<2x2x4x192xf32> to vector<2x2x2x64xf32>
    %40 = arith.addf %32, %39 : vector<2x2x2x64xf32>
    %41 = vector.extract_strided_slice %38 {offsets = [0, 0, 1, 64], sizes = [2, 2, 2, 64], strides = [1, 1, 1, 1]} : vector<2x2x4x192xf32> to vector<2x2x2x64xf32>
    %42 = arith.addf %40, %41 : vector<2x2x2x64xf32>
    %43 = vector.extract_strided_slice %38 {offsets = [0, 0, 2, 128], sizes = [2, 2, 2, 64], strides = [1, 1, 1, 1]} : vector<2x2x4x192xf32> to vector<2x2x2x64xf32>
    %44 = arith.addf %42, %43 : vector<2x2x2x64xf32>
    %c0_39 = arith.constant 0 : index
    %c0_40 = arith.constant 0 : index
    %45 = vector.load %arg3[%c0_39, %c0_40] : memref<1x64xf32, #tpu.memory_space<vmem>>, vector<1x64xf32>
    %46 = vector.shape_cast %45 : vector<1x64xf32> to vector<1x1x1x64xf32>
    %47 = vector.broadcast %46 : vector<1x1x1x64xf32> to vector<2x2x2x64xf32>
    %48 = arith.addf %44, %47 : vector<2x2x2x64xf32>
    %cst_41 = arith.constant 0.000000e+00 : f32
    %49 = vector.broadcast %cst_41 : f32 to vector<2x2x2x64xf32>
    %50 = arith.maximumf %48, %49 : vector<2x2x2x64xf32>
    %cst_42 = arith.constant 0.000000e+00 : bf16
    %51 = vector.broadcast %cst_42 : bf16 to vector<2x1x4x64xbf16>
    %c0_43 = arith.constant 0 : index
    %c0_44 = arith.constant 0 : index
    %c0_45 = arith.constant 0 : index
    %c0_46 = arith.constant 0 : index
    %52 = vector.load %arg8[%c0_43, %c0_44, %c0_45, %c0_46] : memref<2x4x4x64xbf16, #tpu.memory_space<vmem>>, vector<2x1x4x64xbf16>
    tpu.vector_store %arg8[%c0_43, %c0_44, %c0_45, %c0_46], %51 {strides = array<i32>} : memref<2x4x4x64xbf16, #tpu.memory_space<vmem>>, vector<2x1x4x64xbf16>,
    %cst_47 = arith.constant 0.000000e+00 : bf16
    %53 = vector.broadcast %cst_47 : bf16 to vector<2x1x4x64xbf16>
    %c0_48 = arith.constant 0 : index
    %c3_49 = arith.constant 3 : index
    %c0_50 = arith.constant 0 : index
    %c0_51 = arith.constant 0 : index
    %54 = vector.load %arg8[%c0_48, %c3_49, %c0_50, %c0_51] : memref<2x4x4x64xbf16, #tpu.memory_space<vmem>>, vector<2x1x4x64xbf16>
    tpu.vector_store %arg8[%c0_48, %c3_49, %c0_50, %c0_51], %53 {strides = array<i32>} : memref<2x4x4x64xbf16, #tpu.memory_space<vmem>>, vector<2x1x4x64xbf16>,
    %cst_52 = arith.constant 0.000000e+00 : bf16
    %55 = vector.broadcast %cst_52 : bf16 to vector<2x2x1x64xbf16>
    %56 = arith.truncf %50 : vector<2x2x2x64xf32> to vector<2x2x2x64xbf16>
    %57 = tpu.concatenate %55, %56, %55 in 2 : vector<2x2x1x64xbf16>, vector<2x2x2x64xbf16>, vector<2x2x1x64xbf16> -> vector<2x2x4x64xbf16>
    %c0_53 = arith.constant 0 : index
    %c1_54 = arith.constant 1 : index
    %c0_55 = arith.constant 0 : index
    %c0_56 = arith.constant 0 : index
    %58 = vector.load %arg8[%c0_53, %c1_54, %c0_55, %c0_56] : memref<2x4x4x64xbf16, #tpu.memory_space<vmem>>, vector<2x2x4x64xbf16>
    tpu.vector_store %arg8[%c0_53, %c1_54, %c0_55, %c0_56], %57 {strides = array<i32>} : memref<2x4x4x64xbf16, #tpu.memory_space<vmem>>, vector<2x2x4x64xbf16>,
    %c0_57 = arith.constant 0 : index
    %c0_58 = arith.constant 0 : index
    %c0_59 = arith.constant 0 : index
    %c0_60 = arith.constant 0 : index
    %59 = vector.load %arg8[%c0_57, %c0_58, %c0_59, %c0_60] : memref<2x4x4x64xbf16, #tpu.memory_space<vmem>>, vector<2x2x2x64xbf16>
    %c0_61 = arith.constant 0 : index
    %c0_62 = arith.constant 0 : index
    %c1_63 = arith.constant 1 : index
    %c0_64 = arith.constant 0 : index
    %60 = vector.load %arg8[%c0_61, %c0_62, %c1_63, %c0_64] : memref<2x4x4x64xbf16, #tpu.memory_space<vmem>>, vector<2x2x2x64xbf16>
    %c0_65 = arith.constant 0 : index
    %c0_66 = arith.constant 0 : index
    %c2_67 = arith.constant 2 : index
    %c0_68 = arith.constant 0 : index
    %61 = vector.load %arg8[%c0_65, %c0_66, %c2_67, %c0_68] : memref<2x4x4x64xbf16, #tpu.memory_space<vmem>>, vector<2x2x2x64xbf16>
    %c0_69 = arith.constant 0 : index
    %c1_70 = arith.constant 1 : index
    %c0_71 = arith.constant 0 : index
    %c0_72 = arith.constant 0 : index
    %62 = vector.load %arg8[%c0_69, %c1_70, %c0_71, %c0_72] : memref<2x4x4x64xbf16, #tpu.memory_space<vmem>>, vector<2x2x2x64xbf16>
    %c0_73 = arith.constant 0 : index
    %c1_74 = arith.constant 1 : index
    %c1_75 = arith.constant 1 : index
    %c0_76 = arith.constant 0 : index
    %63 = vector.load %arg8[%c0_73, %c1_74, %c1_75, %c0_76] : memref<2x4x4x64xbf16, #tpu.memory_space<vmem>>, vector<2x2x2x64xbf16>
    %c0_77 = arith.constant 0 : index
    %c1_78 = arith.constant 1 : index
    %c2_79 = arith.constant 2 : index
    %c0_80 = arith.constant 0 : index
    %64 = vector.load %arg8[%c0_77, %c1_78, %c2_79, %c0_80] : memref<2x4x4x64xbf16, #tpu.memory_space<vmem>>, vector<2x2x2x64xbf16>
    %c0_81 = arith.constant 0 : index
    %c2_82 = arith.constant 2 : index
    %c0_83 = arith.constant 0 : index
    %c0_84 = arith.constant 0 : index
    %65 = vector.load %arg8[%c0_81, %c2_82, %c0_83, %c0_84] : memref<2x4x4x64xbf16, #tpu.memory_space<vmem>>, vector<2x2x2x64xbf16>
    %c0_85 = arith.constant 0 : index
    %c2_86 = arith.constant 2 : index
    %c1_87 = arith.constant 1 : index
    %c0_88 = arith.constant 0 : index
    %66 = vector.load %arg8[%c0_85, %c2_86, %c1_87, %c0_88] : memref<2x4x4x64xbf16, #tpu.memory_space<vmem>>, vector<2x2x2x64xbf16>
    %c0_89 = arith.constant 0 : index
    %c2_90 = arith.constant 2 : index
    %c2_91 = arith.constant 2 : index
    %c0_92 = arith.constant 0 : index
    %67 = vector.load %arg8[%c0_89, %c2_90, %c2_91, %c0_92] : memref<2x4x4x64xbf16, #tpu.memory_space<vmem>>, vector<2x2x2x64xbf16>
    %68 = tpu.concatenate %59, %60, %61, %62, %63, %64, %65, %66, %67 in 3 : vector<2x2x2x64xbf16>, vector<2x2x2x64xbf16>, vector<2x2x2x64xbf16>, vector<2x2x2x64xbf16>, vector<2x2x2x64xbf16>, vector<2x2x2x64xbf16>, vector<2x2x2x64xbf16>, vector<2x2x2x64xbf16>, vector<2x2x2x64xbf16> -> vector<2x2x2x576xbf16>
    %69 = vector.shape_cast %68 : vector<2x2x2x576xbf16> to vector<8x576xbf16>
    %c0_93 = arith.constant 0 : index
    %c0_94 = arith.constant 0 : index
    %70 = vector.load %arg4[%c0_93, %c0_94] : memref<576x64xbf16, #tpu.memory_space<vmem>>, vector<576x64xbf16>
    %cst_95 = arith.constant dense<0.000000e+00> : vector<8x64xf32>
    %71 = tpu.matmul %69, %70, %cst_95 {dimension_numbers = #tpu.dot_dimension_numbers<[1], [0], [0], [1], [0, 0, 1, 1], [], []>} : vector<8x576xbf16>, vector<576x64xbf16>, vector<8x64xf32> -> vector<8x64xf32>
    %c0_96 = arith.constant 0 : index
    %c0_97 = arith.constant 0 : index
    %72 = vector.load %arg5[%c0_96, %c0_97] : memref<1x64xf32, #tpu.memory_space<vmem>>, vector<1x64xf32>
    %73 = vector.broadcast %72 : vector<1x64xf32> to vector<8x64xf32>
    %74 = arith.addf %71, %73 : vector<8x64xf32>
    %cst_98 = arith.constant 0.000000e+00 : f32
    %75 = vector.broadcast %cst_98 : f32 to vector<8x64xf32>
    %76 = arith.maximumf %74, %75 : vector<8x64xf32>
    %77 = vector.shape_cast %76 : vector<8x64xf32> to vector<2x2x2x64xf32>
    %78 = arith.truncf %77 : vector<2x2x2x64xf32> to vector<2x2x2x64xbf16>
    %c0_99 = arith.constant 0 : index
    %c0_100 = arith.constant 0 : index
    %c0_101 = arith.constant 0 : index
    %c0_102 = arith.constant 0 : index
    %79 = vector.load %arg6[%c0_99, %c0_100, %c0_101, %c0_102] : memref<2x2x2x64xbf16, #tpu.memory_space<vmem>>, vector<2x2x2x64xbf16>
    tpu.vector_store %arg6[%c0_99, %c0_100, %c0_101, %c0_102], %78 {strides = array<i32>} : memref<2x2x2x64xbf16, #tpu.memory_space<vmem>>, vector<2x2x2x64xbf16>,
    return
  }
  func.func @transform_0(%arg0: i32) -> (i32, i32, i32, i32) {
    %c0_i32 = arith.constant 0 : i32
    %c0_i32_0 = arith.constant 0 : i32
    %c0_i32_1 = arith.constant 0 : i32
    %c0_i32_2 = arith.constant 0 : i32
    return %arg0, %c0_i32, %c0_i32_0, %c0_i32_1 : i32, i32, i32, i32
  }
  func.func @transform_1(%arg0: i32) -> (i32, i32, i32) {
    %c0_i32 = arith.constant 0 : i32
    %c0_i32_0 = arith.constant 0 : i32
    %c0_i32_1 = arith.constant 0 : i32
    %c0_i32_2 = arith.constant 0 : i32
    return %c0_i32, %c0_i32_0, %c0_i32_1 : i32, i32, i32
  }
  func.func @transform_2(%arg0: i32) -> (i32, i32) {
    %c0_i32 = arith.constant 0 : i32
    %c0_i32_0 = arith.constant 0 : i32
    %c0_i32_1 = arith.constant 0 : i32
    return %c0_i32, %c0_i32_0 : i32, i32
  }
  func.func @transform_3(%arg0: i32) -> (i32, i32) {
    %c0_i32 = arith.constant 0 : i32
    %c0_i32_0 = arith.constant 0 : i32
    %c0_i32_1 = arith.constant 0 : i32
    return %c0_i32, %c0_i32_0 : i32, i32
  }
  func.func @transform_4(%arg0: i32) -> (i32, i32) {
    %c0_i32 = arith.constant 0 : i32
    %c0_i32_0 = arith.constant 0 : i32
    %c0_i32_1 = arith.constant 0 : i32
    return %c0_i32, %c0_i32_0 : i32, i32
  }
  func.func @transform_5(%arg0: i32) -> (i32, i32, i32, i32) {
    %c0_i32 = arith.constant 0 : i32
    %c0_i32_0 = arith.constant 0 : i32
    %c0_i32_1 = arith.constant 0 : i32
    %c0_i32_2 = arith.constant 0 : i32
    return %arg0, %c0_i32, %c0_i32_0, %c0_i32_1 : i32, i32, i32, i32
  }
}

</mosaic_0001>

<llo_original>
// kernel: tpu_custom_call.1
$region0: #{tpu_custom_call.1}
  #allocation0 [shape = 'u32[]', space=smem, size = 0x4, offset = 0x4, fixed_abs, tag = 'smem constant byte address 0x4 - core index']
  #allocation1 [shape = 'u32[144,128]{1,0:T(1,128)}', space=vmem, size = 0x12000, scoped, tag = 'internal scratch']
  #allocation2 [shape = 'bf16[2,4,4,512]{3,2,1,0:T(4,128)(2,1)}', space=vmem, size = 0x8000, scoped, tag = 'scratch operand']
  #allocation3 [shape = 'bf16[2,4,4,64]{3,2,1,0:T(4,128)(2,1)}', space=vmem, size = 0x2000, scoped, tag = 'scratch operand']
  %s0 = inlined_call_operand.vmem [shape: bf16[2,2,2,512], index: 0, kind: input, shape index: {}]
  %s1 = inlined_call_operand.vmem [shape: bf16[3,512,192], index: 1, kind: input, shape index: {}]
  %s2 = inlined_call_operand.vmem [shape: f32[1,64], index: 2, kind: input, shape index: {}]
  %s3 = inlined_call_operand.vmem [shape: bf16[576,64], index: 3, kind: input, shape index: {}]
  %s4 = inlined_call_operand.vmem [shape: f32[1,64], index: 4, kind: input, shape index: {}]
  %s5 = inlined_call_operand.hbm [shape: bf16[2,2,2,64], index: 5, kind: output, shape index: {}]
  %s6 = sld [smem:[#allocation0]]
  $region30: #{tpu_custom_call.1} parent=0
    _
  %s8 = ssub.s32 1, %s6
  %s9 = scalar_select 0, %s8, %s6
  $region1: #{tpu_custom_call.1} parent=0
    #allocation4 [shape = 'u8[2048]{0}', space=vmem, size = 0x800, scoped, tag = 'output window, operand 0, single buffered']
    #allocation5 [shape = 's32[1]{0}', space=sflag, size = 0x4, scoped, tag = 'scoped memory for tpu_custom_call.1']
    %10 = vsyncpa [#allocation5], 0
    // Predicated region
    $region2: #{tpu_custom_call.1} parent=1 // pred_check
      _
    $region3: #{tpu_custom_call.1} parent=1 // pred_check_branch
      %12 = sbr.rel (0) target = $region5
    $region4: #{tpu_custom_call.1} parent=1 // pred_region
      _
    $region5: #{tpu_custom_call.1} parent=1 // pred_fallthru
      _
    // Predicated region
    $region6: #{tpu_custom_call.1} parent=1 // pred_check
      _
    $region7: #{tpu_custom_call.1} parent=1 // pred_check_branch
      %14 = sbr.rel (0) target = $region9
    $region8: #{tpu_custom_call.1} parent=1 // pred_region
      _
    $region9: #{tpu_custom_call.1} parent=1 // pred_fallthru
      _
    // Predicated region
    $region10: #{tpu_custom_call.1} parent=1 // pred_check
      _
    $region11: #{tpu_custom_call.1} parent=1 // pred_check_branch
      %16 = sbr.rel (0) target = $region13
    $region12: #{tpu_custom_call.1} parent=1 // pred_region
      _
    $region13: #{tpu_custom_call.1} parent=1 // pred_fallthru
      _
    // Predicated region
    $region14: #{tpu_custom_call.1} parent=1 // pred_check
      _
    $region15: #{tpu_custom_call.1} parent=1 // pred_check_branch
      %18 = sbr.rel (0) target = $region17
    $region16: #{tpu_custom_call.1} parent=1 // pred_region
      _
    $region17: #{tpu_custom_call.1} parent=1 // pred_fallthru
      _
    // Predicated region
    $region18: #{tpu_custom_call.1} parent=1 // pred_check
      _
    $region19: #{tpu_custom_call.1} parent=1 // pred_check_branch
      %20 = sbr.rel (0) target = $region21
    $region20: #{tpu_custom_call.1} parent=1 // pred_region
      _
    $region21: #{tpu_custom_call.1} parent=1 // pred_fallthru
      _
    %v22 = vld [vmem:[%s0] sm:$0xf]
    %v23 = vld [vmem:[%s0 + $0x4] sm:$0xf]
    %v24 = vld [vmem:[%s0 + $0x8] sm:$0xf]
    %v25 = vld [vmem:[%s0 + $0xc] sm:$0xf]
    %26 = vst [vmem:[#allocation2] sm:$0xff] 0
    %27 = vst [vmem:[#allocation2 + $0x20] sm:$0xff] 0
    %s28 = scalar_lea.vmem [#allocation2], 24
    %29 = vst [vmem:[%s28] sm:$0xff] 0
    %30 = vst [vmem:[%s28 + $0x20] sm:$0xff] 0
    %v36 = vunpack.c.l.s4 1966171168
    %v37 = vunpack.c.0.s8 %v36
    %v38 = vlaneseq
    %v39 = vshrl.u32 %v38, 7
    %v40 = vsub.s32 %v37, %v39
    %v41 = vrot.slane %v22, %v40
    %v42 = vcombine.high %v41, %v41
    %v44 = vunpack.c.l.s4 1966171168
    %v45 = vunpack.c.0.s8 %v44
    %v46 = vlaneseq
    %v47 = vshrl.u32 %v46, 7
    %v48 = vsub.s32 %v45, %v47
    %v49 = vrot.slane %v41, %v48
    %v51 = vunpack.c.l.s4 1966171168
    %v52 = vunpack.c.0.s8 %v51
    %v53 = vlaneseq
    %v54 = vshrl.u32 %v53, 7
    %v55 = vsub.s32 %v52, %v54
    %v56 = vrot.slane %v42, %v55
    %v57 = vcombine.high %v49, %v49
    %v58 = vcombine.high %v56, %v56
    %v60 = vunpack.c.l.s4 1966171168
    %v61 = vunpack.c.0.s8 %v60
    %v62 = vlaneseq
    %v63 = vshrl.u32 %v62, 7
    %v64 = vsub.s32 %v61, %v63
    %v65 = vrot.slane %v23, %v64
    %v66 = vcombine.high %v65, %v65
    %v68 = vunpack.c.l.s4 1966171168
    %v69 = vunpack.c.0.s8 %v68
    %v70 = vlaneseq
    %v71 = vshrl.u32 %v70, 7
    %v72 = vsub.s32 %v69, %v71
    %v73 = vrot.slane %v65, %v72
    %v75 = vunpack.c.l.s4 1966171168
    %v76 = vunpack.c.0.s8 %v75
    %v77 = vlaneseq
    %v78 = vshrl.u32 %v77, 7
    %v79 = vsub.s32 %v76, %v78
    %v80 = vrot.slane %v66, %v79
    %v81 = vcombine.high %v73, %v73
    %v82 = vcombine.high %v80, %v80
    %v84 = vunpack.c.l.s4 1966171168
    %v85 = vunpack.c.0.s8 %v84
    %v86 = vlaneseq
    %v87 = vshrl.u32 %v86, 7
    %v88 = vsub.s32 %v85, %v87
    %v89 = vrot.slane %v24, %v88
    %v90 = vcombine.high %v89, %v89
    %v92 = vunpack.c.l.s4 1966171168
    %v93 = vunpack.c.0.s8 %v92
    %v94 = vlaneseq
    %v95 = vshrl.u32 %v94, 7
    %v96 = vsub.s32 %v93, %v95
    %v97 = vrot.slane %v89, %v96
    %v99 = vunpack.c.l.s4 1966171168
    %v100 = vunpack.c.0.s8 %v99
    %v101 = vlaneseq
    %v102 = vshrl.u32 %v101, 7
    %v103 = vsub.s32 %v100, %v102
    %v104 = vrot.slane %v90, %v103
    %v105 = vcombine.high %v97, %v97
    %v106 = vcombine.high %v104, %v104
    %v108 = vunpack.c.l.s4 1966171168
    %v109 = vunpack.c.0.s8 %v108
    %v110 = vlaneseq
    %v111 = vshrl.u32 %v110, 7
    %v112 = vsub.s32 %v109, %v111
    %v113 = vrot.slane %v25, %v112
    %v114 = vcombine.high %v113, %v113
    %v116 = vunpack.c.l.s4 1966171168
    %v117 = vunpack.c.0.s8 %v116
    %v118 = vlaneseq
    %v119 = vshrl.u32 %v118, 7
    %v120 = vsub.s32 %v117, %v119
    %v121 = vrot.slane %v113, %v120
    %v123 = vunpack.c.l.s4 1966171168
    %v124 = vunpack.c.0.s8 %v123
    %v125 = vlaneseq
    %v126 = vshrl.u32 %v125, 7
    %v127 = vsub.s32 %v124, %v126
    %v128 = vrot.slane %v114, %v127
    %v129 = vcombine.high %v121, %v121
    %v130 = vcombine.high %v128, %v128
    %v132 = vshrl.u32 %v49, 16
    %v134 = vrot.slane %v132, 7
    %v135 = vshll.u32 %v49, 16
    %v137 = vor.u32 %v134, %v135
    %v139 = vshrl.u32 %v56, 16
    %v141 = vrot.slane %v139, 7
    %v142 = vshll.u32 %v56, 16
    %v144 = vor.u32 %v141, %v142
    %v146 = vshrl.u32 %v57, 16
    %v148 = vrot.slane %v146, 7
    %v149 = vshll.u32 %v57, 16
    %v151 = vor.u32 %v148, %v149
    %v153 = vshrl.u32 %v58, 16
    %v155 = vrot.slane %v153, 7
    %v156 = vshll.u32 %v58, 16
    %v158 = vor.u32 %v155, %v156
    %v160 = vshrl.u32 %v73, 16
    %v162 = vrot.slane %v160, 7
    %v163 = vshll.u32 %v73, 16
    %v165 = vor.u32 %v162, %v163
    %v167 = vshrl.u32 %v80, 16
    %v169 = vrot.slane %v167, 7
    %v170 = vshll.u32 %v80, 16
    %v172 = vor.u32 %v169, %v170
    %v174 = vshrl.u32 %v81, 16
    %v176 = vrot.slane %v174, 7
    %v177 = vshll.u32 %v81, 16
    %v179 = vor.u32 %v176, %v177
    %v181 = vshrl.u32 %v82, 16
    %v183 = vrot.slane %v181, 7
    %v184 = vshll.u32 %v82, 16
    %v186 = vor.u32 %v183, %v184
    %v188 = vshrl.u32 %v97, 16
    %v190 = vrot.slane %v188, 7
    %v191 = vshll.u32 %v97, 16
    %v193 = vor.u32 %v190, %v191
    %v195 = vshrl.u32 %v104, 16
    %v197 = vrot.slane %v195, 7
    %v198 = vshll.u32 %v104, 16
    %v200 = vor.u32 %v197, %v198
    %v202 = vshrl.u32 %v105, 16
    %v204 = vrot.slane %v202, 7
    %v205 = vshll.u32 %v105, 16
    %v207 = vor.u32 %v204, %v205
    %v209 = vshrl.u32 %v106, 16
    %v211 = vrot.slane %v209, 7
    %v212 = vshll.u32 %v106, 16
    %v214 = vor.u32 %v211, %v212
    %v216 = vshrl.u32 %v121, 16
    %v218 = vrot.slane %v216, 7
    %v219 = vshll.u32 %v121, 16
    %v221 = vor.u32 %v218, %v219
    %v223 = vshrl.u32 %v128, 16
    %v225 = vrot.slane %v223, 7
    %v226 = vshll.u32 %v128, 16
    %v228 = vor.u32 %v225, %v226
    %v230 = vshrl.u32 %v129, 16
    %v232 = vrot.slane %v230, 7
    %v233 = vshll.u32 %v129, 16
    %v235 = vor.u32 %v232, %v233
    %v237 = vshrl.u32 %v130, 16
    %v239 = vrot.slane %v237, 7
    %v240 = vshll.u32 %v130, 16
    %v242 = vor.u32 %v239, %v240
    %vm259 = vcmask 1040384
    %vm260 = vsmask.f32 256
    %vm261 = vmand %vm259, %vm260
    %v262 = vsel %vm261, 0, %v137
    %v263 = vsel %vm261, 0, %v144
    %v264 = vsel %vm261, 0, %v151
    %v265 = vsel %vm261, 0, %v158
    %v266 = vsel %vm261, 0, %v165
    %v267 = vsel %vm261, 0, %v172
    %v268 = vsel %vm261, 0, %v179
    %v269 = vsel %vm261, 0, %v186
    %v270 = vsel %vm261, 0, %v193
    %v271 = vsel %vm261, 0, %v200
    %v272 = vsel %vm261, 0, %v207
    %v273 = vsel %vm261, 0, %v214
    %v274 = vsel %vm261, 0, %v221
    %v275 = vsel %vm261, 0, %v228
    %v276 = vsel %vm261, 0, %v235
    %v277 = vsel %vm261, 0, %v242
    %vm278 = vcmask 1041408
    %vm279 = vsmask.f32 1280
    %vm280 = vmand %vm278, %vm279
    %v281 = vsel %vm280, %v262, 0
    %v282 = vsel %vm280, %v263, 0
    %v283 = vsel %vm280, %v264, 0
    %v284 = vsel %vm280, %v265, 0
    %v285 = vsel %vm280, %v266, 0
    %v286 = vsel %vm280, %v267, 0
    %v287 = vsel %vm280, %v268, 0
    %v288 = vsel %vm280, %v269, 0
    %v289 = vsel %vm280, %v270, 0
    %v290 = vsel %vm280, %v271, 0
    %v291 = vsel %vm280, %v272, 0
    %v292 = vsel %vm280, %v273, 0
    %v293 = vsel %vm280, %v274, 0
    %v294 = vsel %vm280, %v275, 0
    %v295 = vsel %vm280, %v276, 0
    %v296 = vsel %vm280, %v277, 0
    %v313 = vcombine.low %v281, %v282
    %v314 = vcombine.low %v283, %v284
    %v316 = vunpack.c.l.s4 1983009808
    %v317 = vunpack.c.0.s8 %v316
    %v318 = vlaneseq
    %v319 = vshrl.u32 %v318, 7
    %v320 = vsub.s32 %v317, %v319
    %v321 = vrot.slane %v313, %v320
    %v323 = vunpack.c.l.s4 1983009808
    %v324 = vunpack.c.0.s8 %v323
    %v325 = vlaneseq
    %v326 = vshrl.u32 %v325, 7
    %v327 = vsub.s32 %v324, %v326
    %v328 = vrot.slane %v314, %v327
    %v329 = vcombine.low %v321, %v328
    %v330 = vcombine.low %v285, %v286
    %v331 = vcombine.low %v287, %v288
    %v333 = vunpack.c.l.s4 1983009808
    %v334 = vunpack.c.0.s8 %v333
    %v335 = vlaneseq
    %v336 = vshrl.u32 %v335, 7
    %v337 = vsub.s32 %v334, %v336
    %v338 = vrot.slane %v330, %v337
    %v340 = vunpack.c.l.s4 1983009808
    %v341 = vunpack.c.0.s8 %v340
    %v342 = vlaneseq
    %v343 = vshrl.u32 %v342, 7
    %v344 = vsub.s32 %v341, %v343
    %v345 = vrot.slane %v331, %v344
    %v346 = vcombine.low %v338, %v345
    %v347 = vcombine.low %v289, %v290
    %v348 = vcombine.low %v291, %v292
    %v350 = vunpack.c.l.s4 1983009808
    %v351 = vunpack.c.0.s8 %v350
    %v352 = vlaneseq
    %v353 = vshrl.u32 %v352, 7
    %v354 = vsub.s32 %v351, %v353
    %v355 = vrot.slane %v347, %v354
    %v357 = vunpack.c.l.s4 1983009808
    %v358 = vunpack.c.0.s8 %v357
    %v359 = vlaneseq
    %v360 = vshrl.u32 %v359, 7
    %v361 = vsub.s32 %v358, %v360
    %v362 = vrot.slane %v348, %v361
    %v363 = vcombine.low %v355, %v362
    %v364 = vcombine.low %v293, %v294
    %v365 = vcombine.low %v295, %v296
    %v367 = vunpack.c.l.s4 1983009808
    %v368 = vunpack.c.0.s8 %v367
    %v369 = vlaneseq
    %v370 = vshrl.u32 %v369, 7
    %v371 = vsub.s32 %v368, %v370
    %v372 = vrot.slane %v364, %v371
    %v374 = vunpack.c.l.s4 1983009808
    %v375 = vunpack.c.0.s8 %v374
    %v376 = vlaneseq
    %v377 = vshrl.u32 %v376, 7
    %v378 = vsub.s32 %v375, %v377
    %v379 = vrot.slane %v365, %v378
    %v380 = vcombine.low %v372, %v379
    %s385 = scalar_lea.vmem [#allocation2], 8
    %386 = vst [vmem:[%s385] sm:$0xff] %v329
    %387 = vst [vmem:[%s385 + $0x8] sm:$0xff] %v346
    %388 = vst [vmem:[%s385 + $0x20] sm:$0xff] %v363
    %389 = vst [vmem:[%s385 + $0x28] sm:$0xff] %v380
    %v390 = vld [vmem:[#allocation2] sm:$0xff]
    %v391 = vld [vmem:[#allocation2 + $0x8] sm:$0xff]
    %v392 = vld [vmem:[#allocation2 + $0x20] sm:$0xff]
    %v393 = vld [vmem:[#allocation2 + $0x28] sm:$0xff]
    %v394 = vld [vmem:[%s1] sm:$0xff]
    %v395 = vld [vmem:[%s1 + $0x8] sm:$0xff]
    %v396 = vld [vmem:[%s1 + $0x10] sm:$0xff]
    %v397 = vld [vmem:[%s1 + $0x18] sm:$0xff]
    %v398 = vld [vmem:[%s1 + $0x20] sm:$0xff]
    %v399 = vld [vmem:[%s1 + $0x28] sm:$0xff]
    %v400 = vld [vmem:[%s1 + $0x30] sm:$0xff]
    %v401 = vld [vmem:[%s1 + $0x38] sm:$0xff]
    %v402 = vld [vmem:[%s1 + $0x40] sm:$0xff]
    %v403 = vld [vmem:[%s1 + $0x48] sm:$0xff]
    %v404 = vld [vmem:[%s1 + $0x50] sm:$0xff]
    %v405 = vld [vmem:[%s1 + $0x58] sm:$0xff]
    %v406 = vld [vmem:[%s1 + $0x60] sm:$0xff]
    %v407 = vld [vmem:[%s1 + $0x68] sm:$0xff]
    %v408 = vld [vmem:[%s1 + $0x70] sm:$0xff]
    %v409 = vld [vmem:[%s1 + $0x78] sm:$0xff]
    %v410 = vld [vmem:[%s1 + $0x80] sm:$0xff]
    %v411 = vld [vmem:[%s1 + $0x88] sm:$0xff]
    %v412 = vld [vmem:[%s1 + $0x90] sm:$0xff]
    %v413 = vld [vmem:[%s1 + $0x98] sm:$0xff]
    %v414 = vld [vmem:[%s1 + $0xa0] sm:$0xff]
    %v415 = vld [vmem:[%s1 + $0xa8] sm:$0xff]
    %v416 = vld [vmem:[%s1 + $0xb0] sm:$0xff]
    %v417 = vld [vmem:[%s1 + $0xb8] sm:$0xff]
    %v418 = vld [vmem:[%s1 + $0xc0] sm:$0xff]
    %v419 = vld [vmem:[%s1 + $0xc8] sm:$0xff]
    %v420 = vld [vmem:[%s1 + $0xd0] sm:$0xff]
    %v421 = vld [vmem:[%s1 + $0xd8] sm:$0xff]
    %v422 = vld [vmem:[%s1 + $0xe0] sm:$0xff]
    %v423 = vld [vmem:[%s1 + $0xe8] sm:$0xff]
    %v424 = vld [vmem:[%s1 + $0xf0] sm:$0xff]
    %v425 = vld [vmem:[%s1 + $0xf8] sm:$0xff]
    %v426 = vld [vmem:[%s1 + $0x100] sm:$0xff]
    %v427 = vld [vmem:[%s1 + $0x108] sm:$0xff]
    %v428 = vld [vmem:[%s1 + $0x110] sm:$0xff]
    %v429 = vld [vmem:[%s1 + $0x118] sm:$0xff]
    %v430 = vld [vmem:[%s1 + $0x120] sm:$0xff]
    %v431 = vld [vmem:[%s1 + $0x128] sm:$0xff]
    %v432 = vld [vmem:[%s1 + $0x130] sm:$0xff]
    %v433 = vld [vmem:[%s1 + $0x138] sm:$0xff]
    %v434 = vld [vmem:[%s1 + $0x140] sm:$0xff]
    %v435 = vld [vmem:[%s1 + $0x148] sm:$0xff]
    %v436 = vld [vmem:[%s1 + $0x150] sm:$0xff]
    %v437 = vld [vmem:[%s1 + $0x158] sm:$0xff]
    %v438 = vld [vmem:[%s1 + $0x160] sm:$0xff]
    %v439 = vld [vmem:[%s1 + $0x168] sm:$0xff]
    %v440 = vld [vmem:[%s1 + $0x170] sm:$0xff]
    %v441 = vld [vmem:[%s1 + $0x178] sm:$0xff]
    %v442 = vld [vmem:[%s1 + $0x180] sm:$0xff]
    %v443 = vld [vmem:[%s1 + $0x188] sm:$0xff]
    %v444 = vld [vmem:[%s1 + $0x190] sm:$0xff]
    %v445 = vld [vmem:[%s1 + $0x198] sm:$0xff]
    %v446 = vld [vmem:[%s1 + $0x1a0] sm:$0xff]
    %v447 = vld [vmem:[%s1 + $0x1a8] sm:$0xff]
    %v448 = vld [vmem:[%s1 + $0x1b0] sm:$0xff]
    %v449 = vld [vmem:[%s1 + $0x1b8] sm:$0xff]
    %v450 = vld [vmem:[%s1 + $0x1c0] sm:$0xff]
    %v451 = vld [vmem:[%s1 + $0x1c8] sm:$0xff]
    %v452 = vld [vmem:[%s1 + $0x1d0] sm:$0xff]
    %v453 = vld [vmem:[%s1 + $0x1d8] sm:$0xff]
    %v454 = vld [vmem:[%s1 + $0x1e0] sm:$0xff]
    %v455 = vld [vmem:[%s1 + $0x1e8] sm:$0xff]
    %v456 = vld [vmem:[%s1 + $0x1f0] sm:$0xff]
    %v457 = vld [vmem:[%s1 + $0x1f8] sm:$0xff]
    %v462 = vcombine.low %v390, %v391
    %v463 = vcombine.high %v390, %v391
    %v464 = vcombine.low %v392, %v393
    %v465 = vcombine.high %v392, %v393
    %v467 = vunpack.c.l.s4 1983009808
    %v468 = vunpack.c.0.s8 %v467
    %v469 = vlaneseq
    %v470 = vshrl.u32 %v469, 7
    %v471 = vsub.s32 %v468, %v470
    %v472 = vrot.slane %v462, %v471
    %v474 = vunpack.c.l.s4 1983009808
    %v475 = vunpack.c.0.s8 %v474
    %v476 = vlaneseq
    %v477 = vshrl.u32 %v476, 7
    %v478 = vsub.s32 %v475, %v477
    %v479 = vrot.slane %v463, %v478
    %v481 = vunpack.c.l.s4 1983009808
    %v482 = vunpack.c.0.s8 %v481
    %v483 = vlaneseq
    %v484 = vshrl.u32 %v483, 7
    %v485 = vsub.s32 %v482, %v484
    %v486 = vrot.slane %v464, %v485
    %v488 = vunpack.c.l.s4 1983009808
    %v489 = vunpack.c.0.s8 %v488
    %v490 = vlaneseq
    %v491 = vshrl.u32 %v490, 7
    %v492 = vsub.s32 %v489, %v491
    %v493 = vrot.slane %v465, %v492
    %v494 = vcombine.low %v472, %v486
    %v495 = vcombine.high %v472, %v486
    %v496 = vcombine.low %v479, %v493
    %v497 = vcombine.high %v479, %v493
    %v566 = vunpack.c.l.b16 %v394
    %v567 = vunpack.c.h.b16 %v394
    %v568 = vunpack.c.l.b16 %v395
    %v569 = vunpack.c.h.b16 %v395
    %v570 = vunpack.c.l.b16 %v396
    %v571 = vunpack.c.h.b16 %v396
    %v572 = vunpack.c.l.b16 %v397
    %v573 = vunpack.c.h.b16 %v397
    %v574 = vunpack.c.l.b16 %v398
    %v575 = vunpack.c.h.b16 %v398
    %v576 = vunpack.c.l.b16 %v399
    %v577 = vunpack.c.h.b16 %v399
    %v578 = vunpack.c.l.b16 %v400
    %v579 = vunpack.c.h.b16 %v400
    %v580 = vunpack.c.l.b16 %v401
    %v581 = vunpack.c.h.b16 %v401
    %v582 = vunpack.c.l.b16 %v402
    %v583 = vunpack.c.h.b16 %v402
    %v584 = vunpack.c.l.b16 %v403
    %v585 = vunpack.c.h.b16 %v403
    %v586 = vunpack.c.l.b16 %v404
    %v587 = vunpack.c.h.b16 %v404
    %v588 = vunpack.c.l.b16 %v405
    %v589 = vunpack.c.h.b16 %v405
    %v590 = vunpack.c.l.b16 %v406
    %v591 = vunpack.c.h.b16 %v406
    %v592 = vunpack.c.l.b16 %v407
    %v593 = vunpack.c.h.b16 %v407
    %v594 = vunpack.c.l.b16 %v408
    %v595 = vunpack.c.h.b16 %v408
    %v596 = vunpack.c.l.b16 %v409
    %v597 = vunpack.c.h.b16 %v409
    %v598 = vunpack.c.l.b16 %v410
    %v599 = vunpack.c.h.b16 %v410
    %v600 = vunpack.c.l.b16 %v411
    %v601 = vunpack.c.h.b16 %v411
    %v602 = vunpack.c.l.b16 %v412
    %v603 = vunpack.c.h.b16 %v412
    %v604 = vunpack.c.l.b16 %v413
    %v605 = vunpack.c.h.b16 %v413
    %v606 = vunpack.c.l.b16 %v414
    %v607 = vunpack.c.h.b16 %v414
    %v608 = vunpack.c.l.b16 %v415
    %v609 = vunpack.c.h.b16 %v415
    %v610 = vunpack.c.l.b16 %v416
    %v611 = vunpack.c.h.b16 %v416
    %v612 = vunpack.c.l.b16 %v417
    %v613 = vunpack.c.h.b16 %v417
    %v614 = vunpack.c.l.b16 %v418
    %v615 = vunpack.c.h.b16 %v418
    %v616 = vunpack.c.l.b16 %v419
    %v617 = vunpack.c.h.b16 %v419
    %v618 = vunpack.c.l.b16 %v420
    %v619 = vunpack.c.h.b16 %v420
    %v620 = vunpack.c.l.b16 %v421
    %v621 = vunpack.c.h.b16 %v421
    %v622 = vunpack.c.l.b16 %v422
    %v623 = vunpack.c.h.b16 %v422
    %v624 = vunpack.c.l.b16 %v423
    %v625 = vunpack.c.h.b16 %v423
    %v626 = vunpack.c.l.b16 %v424
    %v627 = vunpack.c.h.b16 %v424
    %v628 = vunpack.c.l.b16 %v425
    %v629 = vunpack.c.h.b16 %v425
    %v630 = vunpack.c.l.b16 %v426
    %v631 = vunpack.c.h.b16 %v426
    %v632 = vunpack.c.l.b16 %v427
    %v633 = vunpack.c.h.b16 %v427
    %v634 = vunpack.c.l.b16 %v428
    %v635 = vunpack.c.h.b16 %v428
    %v636 = vunpack.c.l.b16 %v429
    %v637 = vunpack.c.h.b16 %v429
    %v638 = vunpack.c.l.b16 %v430
    %v639 = vunpack.c.h.b16 %v430
    %v640 = vunpack.c.l.b16 %v431
    %v641 = vunpack.c.h.b16 %v431
    %v642 = vunpack.c.l.b16 %v432
    %v643 = vunpack.c.h.b16 %v432
    %v644 = vunpack.c.l.b16 %v433
    %v645 = vunpack.c.h.b16 %v433
    %v646 = vunpack.c.l.b16 %v434
    %v647 = vunpack.c.h.b16 %v434
    %v648 = vunpack.c.l.b16 %v435
    %v649 = vunpack.c.h.b16 %v435
    %v650 = vunpack.c.l.b16 %v436
    %v651 = vunpack.c.h.b16 %v436
    %v652 = vunpack.c.l.b16 %v437
    %v653 = vunpack.c.h.b16 %v437
    %v654 = vunpack.c.l.b16 %v438
    %v655 = vunpack.c.h.b16 %v438
    %v656 = vunpack.c.l.b16 %v439
    %v657 = vunpack.c.h.b16 %v439
    %v658 = vunpack.c.l.b16 %v440
    %v659 = vunpack.c.h.b16 %v440
    %v660 = vunpack.c.l.b16 %v441
    %v661 = vunpack.c.h.b16 %v441
    %v662 = vunpack.c.l.b16 %v442
    %v663 = vunpack.c.h.b16 %v442
    %v664 = vunpack.c.l.b16 %v443
    %v665 = vunpack.c.h.b16 %v443
    %v666 = vunpack.c.l.b16 %v444
    %v667 = vunpack.c.h.b16 %v444
    %v668 = vunpack.c.l.b16 %v445
    %v669 = vunpack.c.h.b16 %v445
    %v670 = vunpack.c.l.b16 %v446
    %v671 = vunpack.c.h.b16 %v446
    %v672 = vunpack.c.l.b16 %v447
    %v673 = vunpack.c.h.b16 %v447
    %v674 = vunpack.c.l.b16 %v448
    %v675 = vunpack.c.h.b16 %v448
    %v676 = vunpack.c.l.b16 %v449
    %v677 = vunpack.c.h.b16 %v449
    %v678 = vunpack.c.l.b16 %v450
    %v679 = vunpack.c.h.b16 %v450
    %v680 = vunpack.c.l.b16 %v451
    %v681 = vunpack.c.h.b16 %v451
    %v682 = vunpack.c.l.b16 %v452
    %v683 = vunpack.c.h.b16 %v452
    %v684 = vunpack.c.l.b16 %v453
    %v685 = vunpack.c.h.b16 %v453
    %v686 = vunpack.c.l.b16 %v454
    %v687 = vunpack.c.h.b16 %v454
    %v688 = vunpack.c.l.b16 %v455
    %v689 = vunpack.c.h.b16 %v455
    %v690 = vunpack.c.l.b16 %v456
    %v691 = vunpack.c.h.b16 %v456
    %v692 = vunpack.c.l.b16 %v457
    %v693 = vunpack.c.h.b16 %v457
    %v694 = vpack.c.b16 %v568, %v566
    %v695 = vpack.c.b16 %v569, %v567
    %v696 = vpack.c.b16 %v572, %v570
    %v697 = vpack.c.b16 %v573, %v571
    %v698 = vpack.c.b16 %v576, %v574
    %v699 = vpack.c.b16 %v577, %v575
    %v700 = vpack.c.b16 %v580, %v578
    %v701 = vpack.c.b16 %v581, %v579
    %v702 = vpack.c.b16 %v584, %v582
    %v703 = vpack.c.b16 %v585, %v583
    %v704 = vpack.c.b16 %v588, %v586
    %v705 = vpack.c.b16 %v589, %v587
    %v706 = vpack.c.b16 %v592, %v590
    %v707 = vpack.c.b16 %v593, %v591
    %v708 = vpack.c.b16 %v596, %v594
    %v709 = vpack.c.b16 %v597, %v595
    %v710 = vpack.c.b16 %v600, %v598
    %v711 = vpack.c.b16 %v601, %v599
    %v712 = vpack.c.b16 %v604, %v602
    %v713 = vpack.c.b16 %v605, %v603
    %v714 = vpack.c.b16 %v608, %v606
    %v715 = vpack.c.b16 %v609, %v607
    %v716 = vpack.c.b16 %v612, %v610
    %v717 = vpack.c.b16 %v613, %v611
    %v718 = vpack.c.b16 %v616, %v614
    %v719 = vpack.c.b16 %v617, %v615
    %v720 = vpack.c.b16 %v620, %v618
    %v721 = vpack.c.b16 %v621, %v619
    %v722 = vpack.c.b16 %v624, %v622
    %v723 = vpack.c.b16 %v625, %v623
    %v724 = vpack.c.b16 %v628, %v626
    %v725 = vpack.c.b16 %v629, %v627
    %v726 = vpack.c.b16 %v632, %v630
    %v727 = vpack.c.b16 %v633, %v631
    %v728 = vpack.c.b16 %v636, %v634
    %v729 = vpack.c.b16 %v637, %v635
    %v730 = vpack.c.b16 %v640, %v638
    %v731 = vpack.c.b16 %v641, %v639
    %v732 = vpack.c.b16 %v644, %v642
    %v733 = vpack.c.b16 %v645, %v643
    %v734 = vpack.c.b16 %v648, %v646
    %v735 = vpack.c.b16 %v649, %v647
    %v736 = vpack.c.b16 %v652, %v650
    %v737 = vpack.c.b16 %v653, %v651
    %v738 = vpack.c.b16 %v656, %v654
    %v739 = vpack.c.b16 %v657, %v655
    %v740 = vpack.c.b16 %v660, %v658
    %v741 = vpack.c.b16 %v661, %v659
    %v742 = vpack.c.b16 %v664, %v662
    %v743 = vpack.c.b16 %v665, %v663
    %v744 = vpack.c.b16 %v668, %v666
    %v745 = vpack.c.b16 %v669, %v667
    %v746 = vpack.c.b16 %v672, %v670
    %v747 = vpack.c.b16 %v673, %v671
    %v748 = vpack.c.b16 %v676, %v674
    %v749 = vpack.c.b16 %v677, %v675
    %v750 = vpack.c.b16 %v680, %v678
    %v751 = vpack.c.b16 %v681, %v679
    %v752 = vpack.c.b16 %v684, %v682
    %v753 = vpack.c.b16 %v685, %v683
    %v754 = vpack.c.b16 %v688, %v686
    %v755 = vpack.c.b16 %v689, %v687
    %v756 = vpack.c.b16 %v692, %v690
    %v757 = vpack.c.b16 %v693, %v691
    %822 = vmatprep.subr.bf16.mxu0 %v695
    %823 = vmatpush1.bf16.msra.mxu0 %v694
    %824 = vmatprep.subr.bf16.mxu0 %v697
    %825 = vmatpush1.bf16.msra.mxu0 %v696
    %826 = vmatprep.subr.bf16.mxu0 %v699
    %827 = vmatpush1.bf16.msra.mxu0 %v698
    %828 = vmatprep.subr.bf16.mxu0 %v701
    %829 = vmatpush1.bf16.msra.mxu0 %v700
    %830 = vmatprep.subr.bf16.mxu0 %v703
    %831 = vmatpush1.bf16.msra.mxu0 %v702
    %832 = vmatprep.subr.bf16.mxu0 %v705
    %833 = vmatpush1.bf16.msra.mxu0 %v704
    %834 = vmatprep.subr.bf16.mxu0 %v707
    %835 = vmatpush1.bf16.msra.mxu0 %v706
    %836 = vmatprep.subr.bf16.mxu0 %v709
    %837 = vmatpush1.bf16.msra.mxu0 %v708
    %838 = vmatprep.subr.bf16.mxu0 %v711
    %839 = vmatpush1.bf16.msra.mxu0 %v710
    %840 = vmatprep.subr.bf16.mxu0 %v713
    %841 = vmatpush1.bf16.msra.mxu0 %v712
    %842 = vmatprep.subr.bf16.mxu0 %v715
    %843 = vmatpush1.bf16.msra.mxu0 %v714
    %844 = vmatprep.subr.bf16.mxu0 %v717
    %845 = vmatpush1.bf16.msra.mxu0 %v716
    %846 = vmatprep.subr.bf16.mxu0 %v719
    %847 = vmatpush1.bf16.msra.mxu0 %v718
    %848 = vmatprep.subr.bf16.mxu0 %v721
    %849 = vmatpush1.bf16.msra.mxu0 %v720
    %850 = vmatprep.subr.bf16.mxu0 %v723
    %851 = vmatpush1.bf16.msra.mxu0 %v722
    %852 = vmatprep.subr.bf16.mxu0 %v725
    %853 = vmatpush1.bf16.msra.mxu0 %v724
    %854 = vmatprep.mubr.bf16.mxu0 %v495
    %855 = vmatmul.mubr.bf16.gmra.mrb[0].mxu0 %v494
    %v856 = vpop.f32.mrb[0].mxu0
    %v857 = vadd.f32 0.0, %v856
    %v858 = vpop.f32.mrb[0].mxu0
    %v859 = vadd.f32 0.0, %v858
    %v860 = vpop.f32.mrb[0].mxu0
    %v861 = vadd.f32 0.0, %v860
    %v862 = vpop.f32.mrb[0].mxu0
    %v863 = vadd.f32 0.0, %v862
    %864 = vdwg.mxu0
    %865 = vmatprep.subr.bf16.mxu0 %v727
    %866 = vmatpush1.bf16.msra.mxu0 %v726
    %867 = vmatprep.subr.bf16.mxu0 %v729
    %868 = vmatpush1.bf16.msra.mxu0 %v728
    %869 = vmatprep.subr.bf16.mxu0 %v731
    %870 = vmatpush1.bf16.msra.mxu0 %v730
    %871 = vmatprep.subr.bf16.mxu0 %v733
    %872 = vmatpush1.bf16.msra.mxu0 %v732
    %873 = vmatprep.subr.bf16.mxu0 %v735
    %874 = vmatpush1.bf16.msra.mxu0 %v734
    %875 = vmatprep.subr.bf16.mxu0 %v737
    %876 = vmatpush1.bf16.msra.mxu0 %v736
    %877 = vmatprep.subr.bf16.mxu0 %v739
    %878 = vmatpush1.bf16.msra.mxu0 %v738
    %879 = vmatprep.subr.bf16.mxu0 %v741
    %880 = vmatpush1.bf16.msra.mxu0 %v740
    %881 = vmatprep.subr.bf16.mxu0 %v743
    %882 = vmatpush1.bf16.msra.mxu0 %v742
    %883 = vmatprep.subr.bf16.mxu0 %v745
    %884 = vmatpush1.bf16.msra.mxu0 %v744
    %885 = vmatprep.subr.bf16.mxu0 %v747
    %886 = vmatpush1.bf16.msra.mxu0 %v746
    %887 = vmatprep.subr.bf16.mxu0 %v749
    %888 = vmatpush1.bf16.msra.mxu0 %v748
    %889 = vmatprep.subr.bf16.mxu0 %v751
    %890 = vmatpush1.bf16.msra.mxu0 %v750
    %891 = vmatprep.subr.bf16.mxu0 %v753
    %892 = vmatpush1.bf16.msra.mxu0 %v752
    %893 = vmatprep.subr.bf16.mxu0 %v755
    %894 = vmatpush1.bf16.msra.mxu0 %v754
    %895 = vmatprep.subr.bf16.mxu0 %v757
    %896 = vmatpush1.bf16.msra.mxu0 %v756
    %897 = vmatprep.mubr.bf16.mxu0 %v497
    %898 = vmatmul.mubr.bf16.gmra.mrb[0].mxu0 %v496
    %v899 = vpop.f32.mrb[0].mxu0
    %v900 = vadd.f32 %v857, %v899
    %v901 = vpop.f32.mrb[0].mxu0
    %v902 = vadd.f32 %v859, %v901
    %v903 = vpop.f32.mrb[0].mxu0
    %v904 = vadd.f32 %v861, %v903
    %v905 = vpop.f32.mrb[0].mxu0
    %v906 = vadd.f32 %v863, %v905
    %907 = vdwg.mxu0
    %v912 = vcombine.low %v900, %v902
    %v913 = vcombine.high %v900, %v902
    %v914 = vcombine.low %v904, %v906
    %v915 = vcombine.high %v904, %v906
    %v920 = vadd.f32 %v912, 0.0
    %v921 = vadd.f32 %v913, 0.0
    %v922 = vadd.f32 %v914, 0.0
    %v923 = vadd.f32 %v915, 0.0
    %v924 = vrot.slane %v912, 5
    %v925 = vrot.slane %v924, 4
    %v926 = vrot.slane %v913, 5
    %v927 = vrot.slane %v926, 4
    %v928 = vrot.slane %v914, 5
    %v929 = vrot.slane %v928, 4
    %v930 = vrot.slane %v915, 5
    %v931 = vrot.slane %v930, 4
    %932 = vrot.lane.b32.xlu0 %v925, 64
    %v933 = vpop.permute.xlu0 %932
    %934 = vrot.lane.b32.xlu0 %v927, 64
    %v935 = vpop.permute.xlu0 %934
    %936 = vrot.lane.b32.xlu0 %v929, 64
    %v937 = vpop.permute.xlu0 %936
    %938 = vrot.lane.b32.xlu0 %v931, 64
    %v939 = vpop.permute.xlu0 %938
    %v944 = vadd.f32 %v920, %v933
    %v945 = vadd.f32 %v921, %v935
    %v946 = vadd.f32 %v922, %v937
    %v947 = vadd.f32 %v923, %v939
    %v948 = vrot.slane %v912, 6
    %v949 = vrot.slane %v948, 4
    %v950 = vrot.slane %v913, 6
    %v951 = vrot.slane %v950, 4
    %v952 = vrot.slane %v914, 6
    %v953 = vrot.slane %v952, 4
    %v954 = vrot.slane %v915, 6
    %v955 = vrot.slane %v954, 4
    %v956 = vrot.slane %v949, 4
    %v957 = vrot.slane %v951, 4
    %v958 = vrot.slane %v953, 4
    %v959 = vrot.slane %v955, 4
    %v964 = vadd.f32 %v944, %v956
    %v965 = vadd.f32 %v945, %v957
    %v966 = vadd.f32 %v946, %v958
    %v967 = vadd.f32 %v947, %v959
    %v968 = vld [vmem:[%s385] sm:$0xff]
    %v969 = vld [vmem:[%s385 + $0x8] sm:$0xff]
    %v970 = vld [vmem:[%s385 + $0x20] sm:$0xff]
    %v971 = vld [vmem:[%s385 + $0x28] sm:$0xff]
    %s972 = scalar_lea.vmem %s1, 512
    %v973 = vld [vmem:[%s972] sm:$0xff]
    %v974 = vld [vmem:[%s972 + $0x8] sm:$0xff]
    %v975 = vld [vmem:[%s972 + $0x10] sm:$0xff]
    %v976 = vld [vmem:[%s972 + $0x18] sm:$0xff]
    %v977 = vld [vmem:[%s972 + $0x20] sm:$0xff]
    %v978 = vld [vmem:[%s972 + $0x28] sm:$0xff]
    %v979 = vld [vmem:[%s972 + $0x30] sm:$0xff]
    %v980 = vld [vmem:[%s972 + $0x38] sm:$0xff]
    %v981 = vld [vmem:[%s972 + $0x40] sm:$0xff]
    %v982 = vld [vmem:[%s972 + $0x48] sm:$0xff]
    %v983 = vld [vmem:[%s972 + $0x50] sm:$0xff]
    %v984 = vld [vmem:[%s972 + $0x58] sm:$0xff]
    %v985 = vld [vmem:[%s972 + $0x60] sm:$0xff]
    %v986 = vld [vmem:[%s972 + $0x68] sm:$0xff]
    %v987 = vld [vmem:[%s972 + $0x70] sm:$0xff]
    %v988 = vld [vmem:[%s972 + $0x78] sm:$0xff]
    %v989 = vld [vmem:[%s972 + $0x80] sm:$0xff]
    %v990 = vld [vmem:[%s972 + $0x88] sm:$0xff]
    %v991 = vld [vmem:[%s972 + $0x90] sm:$0xff]
    %v992 = vld [vmem:[%s972 + $0x98] sm:$0xff]
    %v993 = vld [vmem:[%s972 + $0xa0] sm:$0xff]
    %v994 = vld [vmem:[%s972 + $0xa8] sm:$0xff]
    %v995 = vld [vmem:[%s972 + $0xb0] sm:$0xff]
    %v996 = vld [vmem:[%s972 + $0xb8] sm:$0xff]
    %v997 = vld [vmem:[%s972 + $0xc0] sm:$0xff]
    %v998 = vld [vmem:[%s972 + $0xc8] sm:$0xff]
    %v999 = vld [vmem:[%s972 + $0xd0] sm:$0xff]
    %v1000 = vld [vmem:[%s972 + $0xd8] sm:$0xff]
    %v1001 = vld [vmem:[%s972 + $0xe0] sm:$0xff]
    %v1002 = vld [vmem:[%s972 + $0xe8] sm:$0xff]
    %v1003 = vld [vmem:[%s972 + $0xf0] sm:$0xff]
    %v1004 = vld [vmem:[%s972 + $0xf8] sm:$0xff]
    %v1005 = vld [vmem:[%s972 + $0x100] sm:$0xff]
    %v1006 = vld [vmem:[%s972 + $0x108] sm:$0xff]
    %v1007 = vld [vmem:[%s972 + $0x110] sm:$0xff]
    %v1008 = vld [vmem:[%s972 + $0x118] sm:$0xff]
    %v1009 = vld [vmem:[%s972 + $0x120] sm:$0xff]
    %v1010 = vld [vmem:[%s972 + $0x128] sm:$0xff]
    %v1011 = vld [vmem:[%s972 + $0x130] sm:$0xff]
    %v1012 = vld [vmem:[%s972 + $0x138] sm:$0xff]
    %v1013 = vld [vmem:[%s972 + $0x140] sm:$0xff]
    %v1014 = vld [vmem:[%s972 + $0x148] sm:$0xff]
    %v1015 = vld [vmem:[%s972 + $0x150] sm:$0xff]
    %v1016 = vld [vmem:[%s972 + $0x158] sm:$0xff]
    %v1017 = vld [vmem:[%s972 + $0x160] sm:$0xff]
    %v1018 = vld [vmem:[%s972 + $0x168] sm:$0xff]
    %v1019 = vld [vmem:[%s972 + $0x170] sm:$0xff]
    %v1020 = vld [vmem:[%s972 + $0x178] sm:$0xff]
    %v1021 = vld [vmem:[%s972 + $0x180] sm:$0xff]
    %v1022 = vld [vmem:[%s972 + $0x188] sm:$0xff]
    %v1023 = vld [vmem:[%s972 + $0x190] sm:$0xff]
    %v1024 = vld [vmem:[%s972 + $0x198] sm:$0xff]
    %v1025 = vld [vmem:[%s972 + $0x1a0] sm:$0xff]
    %v1026 = vld [vmem:[%s972 + $0x1a8] sm:$0xff]
    %v1027 = vld [vmem:[%s972 + $0x1b0] sm:$0xff]
    %v1028 = vld [vmem:[%s972 + $0x1b8] sm:$0xff]
    %v1029 = vld [vmem:[%s972 + $0x1c0] sm:$0xff]
    %v1030 = vld [vmem:[%s972 + $0x1c8] sm:$0xff]
    %v1031 = vld [vmem:[%s972 + $0x1d0] sm:$0xff]
    %v1032 = vld [vmem:[%s972 + $0x1d8] sm:$0xff]
    %v1033 = vld [vmem:[%s972 + $0x1e0] sm:$0xff]
    %v1034 = vld [vmem:[%s972 + $0x1e8] sm:$0xff]
    %v1035 = vld [vmem:[%s972 + $0x1f0] sm:$0xff]
    %v1036 = vld [vmem:[%s972 + $0x1f8] sm:$0xff]
    %v1041 = vcombine.low %v968, %v969
    %v1042 = vcombine.high %v968, %v969
    %v1043 = vcombine.low %v970, %v971
    %v1044 = vcombine.high %v970, %v971
    %v1046 = vunpack.c.l.s4 1983009808
    %v1047 = vunpack.c.0.s8 %v1046
    %v1048 = vlaneseq
    %v1049 = vshrl.u32 %v1048, 7
    %v1050 = vsub.s32 %v1047, %v1049
    %v1051 = vrot.slane %v1041, %v1050
    %v1053 = vunpack.c.l.s4 1983009808
    %v1054 = vunpack.c.0.s8 %v1053
    %v1055 = vlaneseq
    %v1056 = vshrl.u32 %v1055, 7
    %v1057 = vsub.s32 %v1054, %v1056
    %v1058 = vrot.slane %v1042, %v1057
    %v1060 = vunpack.c.l.s4 1983009808
    %v1061 = vunpack.c.0.s8 %v1060
    %v1062 = vlaneseq
    %v1063 = vshrl.u32 %v1062, 7
    %v1064 = vsub.s32 %v1061, %v1063
    %v1065 = vrot.slane %v1043, %v1064
    %v1067 = vunpack.c.l.s4 1983009808
    %v1068 = vunpack.c.0.s8 %v1067
    %v1069 = vlaneseq
    %v1070 = vshrl.u32 %v1069, 7
    %v1071 = vsub.s32 %v1068, %v1070
    %v1072 = vrot.slane %v1044, %v1071
    %v1073 = vcombine.low %v1051, %v1065
    %v1074 = vcombine.high %v1051, %v1065
    %v1075 = vcombine.low %v1058, %v1072
    %v1076 = vcombine.high %v1058, %v1072
    %v1145 = vunpack.c.l.b16 %v973
    %v1146 = vunpack.c.h.b16 %v973
    %v1147 = vunpack.c.l.b16 %v974
    %v1148 = vunpack.c.h.b16 %v974
    %v1149 = vunpack.c.l.b16 %v975
    %v1150 = vunpack.c.h.b16 %v975
    %v1151 = vunpack.c.l.b16 %v976
    %v1152 = vunpack.c.h.b16 %v976
    %v1153 = vunpack.c.l.b16 %v977
    %v1154 = vunpack.c.h.b16 %v977
    %v1155 = vunpack.c.l.b16 %v978
    %v1156 = vunpack.c.h.b16 %v978
    %v1157 = vunpack.c.l.b16 %v979
    %v1158 = vunpack.c.h.b16 %v979
    %v1159 = vunpack.c.l.b16 %v980
    %v1160 = vunpack.c.h.b16 %v980
    %v1161 = vunpack.c.l.b16 %v981
    %v1162 = vunpack.c.h.b16 %v981
    %v1163 = vunpack.c.l.b16 %v982
    %v1164 = vunpack.c.h.b16 %v982
    %v1165 = vunpack.c.l.b16 %v983
    %v1166 = vunpack.c.h.b16 %v983
    %v1167 = vunpack.c.l.b16 %v984
    %v1168 = vunpack.c.h.b16 %v984
    %v1169 = vunpack.c.l.b16 %v985
    %v1170 = vunpack.c.h.b16 %v985
    %v1171 = vunpack.c.l.b16 %v986
    %v1172 = vunpack.c.h.b16 %v986
    %v1173 = vunpack.c.l.b16 %v987
    %v1174 = vunpack.c.h.b16 %v987
    %v1175 = vunpack.c.l.b16 %v988
    %v1176 = vunpack.c.h.b16 %v988
    %v1177 = vunpack.c.l.b16 %v989
    %v1178 = vunpack.c.h.b16 %v989
    %v1179 = vunpack.c.l.b16 %v990
    %v1180 = vunpack.c.h.b16 %v990
    %v1181 = vunpack.c.l.b16 %v991
    %v1182 = vunpack.c.h.b16 %v991
    %v1183 = vunpack.c.l.b16 %v992
    %v1184 = vunpack.c.h.b16 %v992
    %v1185 = vunpack.c.l.b16 %v993
    %v1186 = vunpack.c.h.b16 %v993
    %v1187 = vunpack.c.l.b16 %v994
    %v1188 = vunpack.c.h.b16 %v994
    %v1189 = vunpack.c.l.b16 %v995
    %v1190 = vunpack.c.h.b16 %v995
    %v1191 = vunpack.c.l.b16 %v996
    %v1192 = vunpack.c.h.b16 %v996
    %v1193 = vunpack.c.l.b16 %v997
    %v1194 = vunpack.c.h.b16 %v997
    %v1195 = vunpack.c.l.b16 %v998
    %v1196 = vunpack.c.h.b16 %v998
    %v1197 = vunpack.c.l.b16 %v999
    %v1198 = vunpack.c.h.b16 %v999
    %v1199 = vunpack.c.l.b16 %v1000
    %v1200 = vunpack.c.h.b16 %v1000
    %v1201 = vunpack.c.l.b16 %v1001
    %v1202 = vunpack.c.h.b16 %v1001
    %v1203 = vunpack.c.l.b16 %v1002
    %v1204 = vunpack.c.h.b16 %v1002
    %v1205 = vunpack.c.l.b16 %v1003
    %v1206 = vunpack.c.h.b16 %v1003
    %v1207 = vunpack.c.l.b16 %v1004
    %v1208 = vunpack.c.h.b16 %v1004
    %v1209 = vunpack.c.l.b16 %v1005
    %v1210 = vunpack.c.h.b16 %v1005
    %v1211 = vunpack.c.l.b16 %v1006
    %v1212 = vunpack.c.h.b16 %v1006
    %v1213 = vunpack.c.l.b16 %v1007
    %v1214 = vunpack.c.h.b16 %v1007
    %v1215 = vunpack.c.l.b16 %v1008
    %v1216 = vunpack.c.h.b16 %v1008
    %v1217 = vunpack.c.l.b16 %v1009
    %v1218 = vunpack.c.h.b16 %v1009
    %v1219 = vunpack.c.l.b16 %v1010
    %v1220 = vunpack.c.h.b16 %v1010
    %v1221 = vunpack.c.l.b16 %v1011
    %v1222 = vunpack.c.h.b16 %v1011
    %v1223 = vunpack.c.l.b16 %v1012
    %v1224 = vunpack.c.h.b16 %v1012
    %v1225 = vunpack.c.l.b16 %v1013
    %v1226 = vunpack.c.h.b16 %v1013
    %v1227 = vunpack.c.l.b16 %v1014
    %v1228 = vunpack.c.h.b16 %v1014
    %v1229 = vunpack.c.l.b16 %v1015
    %v1230 = vunpack.c.h.b16 %v1015
    %v1231 = vunpack.c.l.b16 %v1016
    %v1232 = vunpack.c.h.b16 %v1016
    %v1233 = vunpack.c.l.b16 %v1017
    %v1234 = vunpack.c.h.b16 %v1017
    %v1235 = vunpack.c.l.b16 %v1018
    %v1236 = vunpack.c.h.b16 %v1018
    %v1237 = vunpack.c.l.b16 %v1019
    %v1238 = vunpack.c.h.b16 %v1019
    %v1239 = vunpack.c.l.b16 %v1020
    %v1240 = vunpack.c.h.b16 %v1020
    %v1241 = vunpack.c.l.b16 %v1021
    %v1242 = vunpack.c.h.b16 %v1021
    %v1243 = vunpack.c.l.b16 %v1022
    %v1244 = vunpack.c.h.b16 %v1022
    %v1245 = vunpack.c.l.b16 %v1023
    %v1246 = vunpack.c.h.b16 %v1023
    %v1247 = vunpack.c.l.b16 %v1024
    %v1248 = vunpack.c.h.b16 %v1024
    %v1249 = vunpack.c.l.b16 %v1025
    %v1250 = vunpack.c.h.b16 %v1025
    %v1251 = vunpack.c.l.b16 %v1026
    %v1252 = vunpack.c.h.b16 %v1026
    %v1253 = vunpack.c.l.b16 %v1027
    %v1254 = vunpack.c.h.b16 %v1027
    %v1255 = vunpack.c.l.b16 %v1028
    %v1256 = vunpack.c.h.b16 %v1028
    %v1257 = vunpack.c.l.b16 %v1029
    %v1258 = vunpack.c.h.b16 %v1029
    %v1259 = vunpack.c.l.b16 %v1030
    %v1260 = vunpack.c.h.b16 %v1030
    %v1261 = vunpack.c.l.b16 %v1031
    %v1262 = vunpack.c.h.b16 %v1031
    %v1263 = vunpack.c.l.b16 %v1032
    %v1264 = vunpack.c.h.b16 %v1032
    %v1265 = vunpack.c.l.b16 %v1033
    %v1266 = vunpack.c.h.b16 %v1033
    %v1267 = vunpack.c.l.b16 %v1034
    %v1268 = vunpack.c.h.b16 %v1034
    %v1269 = vunpack.c.l.b16 %v1035
    %v1270 = vunpack.c.h.b16 %v1035
    %v1271 = vunpack.c.l.b16 %v1036
    %v1272 = vunpack.c.h.b16 %v1036
    %v1273 = vpack.c.b16 %v1147, %v1145
    %v1274 = vpack.c.b16 %v1148, %v1146
    %v1275 = vpack.c.b16 %v1151, %v1149
    %v1276 = vpack.c.b16 %v1152, %v1150
    %v1277 = vpack.c.b16 %v1155, %v1153
    %v1278 = vpack.c.b16 %v1156, %v1154
    %v1279 = vpack.c.b16 %v1159, %v1157
    %v1280 = vpack.c.b16 %v1160, %v1158
    %v1281 = vpack.c.b16 %v1163, %v1161
    %v1282 = vpack.c.b16 %v1164, %v1162
    %v1283 = vpack.c.b16 %v1167, %v1165
    %v1284 = vpack.c.b16 %v1168, %v1166
    %v1285 = vpack.c.b16 %v1171, %v1169
    %v1286 = vpack.c.b16 %v1172, %v1170
    %v1287 = vpack.c.b16 %v1175, %v1173
    %v1288 = vpack.c.b16 %v1176, %v1174
    %v1289 = vpack.c.b16 %v1179, %v1177
    %v1290 = vpack.c.b16 %v1180, %v1178
    %v1291 = vpack.c.b16 %v1183, %v1181
    %v1292 = vpack.c.b16 %v1184, %v1182
    %v1293 = vpack.c.b16 %v1187, %v1185
    %v1294 = vpack.c.b16 %v1188, %v1186
    %v1295 = vpack.c.b16 %v1191, %v1189
    %v1296 = vpack.c.b16 %v1192, %v1190
    %v1297 = vpack.c.b16 %v1195, %v1193
    %v1298 = vpack.c.b16 %v1196, %v1194
    %v1299 = vpack.c.b16 %v1199, %v1197
    %v1300 = vpack.c.b16 %v1200, %v1198
    %v1301 = vpack.c.b16 %v1203, %v1201
    %v1302 = vpack.c.b16 %v1204, %v1202
    %v1303 = vpack.c.b16 %v1207, %v1205
    %v1304 = vpack.c.b16 %v1208, %v1206
    %v1305 = vpack.c.b16 %v1211, %v1209
    %v1306 = vpack.c.b16 %v1212, %v1210
    %v1307 = vpack.c.b16 %v1215, %v1213
    %v1308 = vpack.c.b16 %v1216, %v1214
    %v1309 = vpack.c.b16 %v1219, %v1217
    %v1310 = vpack.c.b16 %v1220, %v1218
    %v1311 = vpack.c.b16 %v1223, %v1221
    %v1312 = vpack.c.b16 %v1224, %v1222
    %v1313 = vpack.c.b16 %v1227, %v1225
    %v1314 = vpack.c.b16 %v1228, %v1226
    %v1315 = vpack.c.b16 %v1231, %v1229
    %v1316 = vpack.c.b16 %v1232, %v1230
    %v1317 = vpack.c.b16 %v1235, %v1233
    %v1318 = vpack.c.b16 %v1236, %v1234
    %v1319 = vpack.c.b16 %v1239, %v1237
    %v1320 = vpack.c.b16 %v1240, %v1238
    %v1321 = vpack.c.b16 %v1243, %v1241
    %v1322 = vpack.c.b16 %v1244, %v1242
    %v1323 = vpack.c.b16 %v1247, %v1245
    %v1324 = vpack.c.b16 %v1248, %v1246
    %v1325 = vpack.c.b16 %v1251, %v1249
    %v1326 = vpack.c.b16 %v1252, %v1250
    %v1327 = vpack.c.b16 %v1255, %v1253
    %v1328 = vpack.c.b16 %v1256, %v1254
    %v1329 = vpack.c.b16 %v1259, %v1257
    %v1330 = vpack.c.b16 %v1260, %v1258
    %v1331 = vpack.c.b16 %v1263, %v1261
    %v1332 = vpack.c.b16 %v1264, %v1262
    %v1333 = vpack.c.b16 %v1267, %v1265
    %v1334 = vpack.c.b16 %v1268, %v1266
    %v1335 = vpack.c.b16 %v1271, %v1269
    %v1336 = vpack.c.b16 %v1272, %v1270
    %1401 = vmatprep.subr.bf16.mxu0 %v1274
    %1402 = vmatpush1.bf16.msra.mxu0 %v1273
    %1403 = vmatprep.subr.bf16.mxu0 %v1276
    %1404 = vmatpush1.bf16.msra.mxu0 %v1275
    %1405 = vmatprep.subr.bf16.mxu0 %v1278
    %1406 = vmatpush1.bf16.msra.mxu0 %v1277
    %1407 = vmatprep.subr.bf16.mxu0 %v1280
    %1408 = vmatpush1.bf16.msra.mxu0 %v1279
    %1409 = vmatprep.subr.bf16.mxu0 %v1282
    %1410 = vmatpush1.bf16.msra.mxu0 %v1281
    %1411 = vmatprep.subr.bf16.mxu0 %v1284
    %1412 = vmatpush1.bf16.msra.mxu0 %v1283
    %1413 = vmatprep.subr.bf16.mxu0 %v1286
    %1414 = vmatpush1.bf16.msra.mxu0 %v1285
    %1415 = vmatprep.subr.bf16.mxu0 %v1288
    %1416 = vmatpush1.bf16.msra.mxu0 %v1287
    %1417 = vmatprep.subr.bf16.mxu0 %v1290
    %1418 = vmatpush1.bf16.msra.mxu0 %v1289
    %1419 = vmatprep.subr.bf16.mxu0 %v1292
    %1420 = vmatpush1.bf16.msra.mxu0 %v1291
    %1421 = vmatprep.subr.bf16.mxu0 %v1294
    %1422 = vmatpush1.bf16.msra.mxu0 %v1293
    %1423 = vmatprep.subr.bf16.mxu0 %v1296
    %1424 = vmatpush1.bf16.msra.mxu0 %v1295
    %1425 = vmatprep.subr.bf16.mxu0 %v1298
    %1426 = vmatpush1.bf16.msra.mxu0 %v1297
    %1427 = vmatprep.subr.bf16.mxu0 %v1300
    %1428 = vmatpush1.bf16.msra.mxu0 %v1299
    %1429 = vmatprep.subr.bf16.mxu0 %v1302
    %1430 = vmatpush1.bf16.msra.mxu0 %v1301
    %1431 = vmatprep.subr.bf16.mxu0 %v1304
    %1432 = vmatpush1.bf16.msra.mxu0 %v1303
    %1433 = vmatprep.mubr.bf16.mxu0 %v1074
    %1434 = vmatmul.mubr.bf16.gmra.mrb[0].mxu0 %v1073
    %v1435 = vpop.f32.mrb[0].mxu0
    %v1436 = vadd.f32 0.0, %v1435
    %v1437 = vpop.f32.mrb[0].mxu0
    %v1438 = vadd.f32 0.0, %v1437
    %v1439 = vpop.f32.mrb[0].mxu0
    %v1440 = vadd.f32 0.0, %v1439
    %v1441 = vpop.f32.mrb[0].mxu0
    %v1442 = vadd.f32 0.0, %v1441
    %1443 = vdwg.mxu0
    %1444 = vmatprep.subr.bf16.mxu0 %v1306
    %1445 = vmatpush1.bf16.msra.mxu0 %v1305
    %1446 = vmatprep.subr.bf16.mxu0 %v1308
    %1447 = vmatpush1.bf16.msra.mxu0 %v1307
    %1448 = vmatprep.subr.bf16.mxu0 %v1310
    %1449 = vmatpush1.bf16.msra.mxu0 %v1309
    %1450 = vmatprep.subr.bf16.mxu0 %v1312
    %1451 = vmatpush1.bf16.msra.mxu0 %v1311
    %1452 = vmatprep.subr.bf16.mxu0 %v1314
    %1453 = vmatpush1.bf16.msra.mxu0 %v1313
    %1454 = vmatprep.subr.bf16.mxu0 %v1316
    %1455 = vmatpush1.bf16.msra.mxu0 %v1315
    %1456 = vmatprep.subr.bf16.mxu0 %v1318
    %1457 = vmatpush1.bf16.msra.mxu0 %v1317
    %1458 = vmatprep.subr.bf16.mxu0 %v1320
    %1459 = vmatpush1.bf16.msra.mxu0 %v1319
    %1460 = vmatprep.subr.bf16.mxu0 %v1322
    %1461 = vmatpush1.bf16.msra.mxu0 %v1321
    %1462 = vmatprep.subr.bf16.mxu0 %v1324
    %1463 = vmatpush1.bf16.msra.mxu0 %v1323
    %1464 = vmatprep.subr.bf16.mxu0 %v1326
    %1465 = vmatpush1.bf16.msra.mxu0 %v1325
    %1466 = vmatprep.subr.bf16.mxu0 %v1328
    %1467 = vmatpush1.bf16.msra.mxu0 %v1327
    %1468 = vmatprep.subr.bf16.mxu0 %v1330
    %1469 = vmatpush1.bf16.msra.mxu0 %v1329
    %1470 = vmatprep.subr.bf16.mxu0 %v1332
    %1471 = vmatpush1.bf16.msra.mxu0 %v1331
    %1472 = vmatprep.subr.bf16.mxu0 %v1334
    %1473 = vmatpush1.bf16.msra.mxu0 %v1333
    %1474 = vmatprep.subr.bf16.mxu0 %v1336
    %1475 = vmatpush1.bf16.msra.mxu0 %v1335
    %1476 = vmatprep.mubr.bf16.mxu0 %v1076
    %1477 = vmatmul.mubr.bf16.gmra.mrb[0].mxu0 %v1075
    %v1478 = vpop.f32.mrb[0].mxu0
    %v1479 = vadd.f32 %v1436, %v1478
    %v1480 = vpop.f32.mrb[0].mxu0
    %v1481 = vadd.f32 %v1438, %v1480
    %v1482 = vpop.f32.mrb[0].mxu0
    %v1483 = vadd.f32 %v1440, %v1482
    %v1484 = vpop.f32.mrb[0].mxu0
    %v1485 = vadd.f32 %v1442, %v1484
    %1486 = vdwg.mxu0
    %v1491 = vcombine.low %v1479, %v1481
    %v1492 = vcombine.high %v1479, %v1481
    %v1493 = vcombine.low %v1483, %v1485
    %v1494 = vcombine.high %v1483, %v1485
    %v1499 = vadd.f32 %v964, %v1491
    %v1500 = vadd.f32 %v965, %v1492
    %v1501 = vadd.f32 %v966, %v1493
    %v1502 = vadd.f32 %v967, %v1494
    %v1503 = vrot.slane %v1491, 5
    %v1504 = vrot.slane %v1503, 4
    %v1505 = vrot.slane %v1492, 5
    %v1506 = vrot.slane %v1505, 4
    %v1507 = vrot.slane %v1493, 5
    %v1508 = vrot.slane %v1507, 4
    %v1509 = vrot.slane %v1494, 5
    %v1510 = vrot.slane %v1509, 4
    %1511 = vrot.lane.b32.xlu0 %v1504, 64
    %v1512 = vpop.permute.xlu0 %1511
    %1513 = vrot.lane.b32.xlu0 %v1506, 64
    %v1514 = vpop.permute.xlu0 %1513
    %1515 = vrot.lane.b32.xlu0 %v1508, 64
    %v1516 = vpop.permute.xlu0 %1515
    %1517 = vrot.lane.b32.xlu0 %v1510, 64
    %v1518 = vpop.permute.xlu0 %1517
    %v1523 = vadd.f32 %v1499, %v1512
    %v1524 = vadd.f32 %v1500, %v1514
    %v1525 = vadd.f32 %v1501, %v1516
    %v1526 = vadd.f32 %v1502, %v1518
    %v1527 = vrot.slane %v1491, 6
    %v1528 = vrot.slane %v1527, 4
    %v1529 = vrot.slane %v1492, 6
    %v1530 = vrot.slane %v1529, 4
    %v1531 = vrot.slane %v1493, 6
    %v1532 = vrot.slane %v1531, 4
    %v1533 = vrot.slane %v1494, 6
    %v1534 = vrot.slane %v1533, 4
    %v1535 = vrot.slane %v1528, 4
    %v1536 = vrot.slane %v1530, 4
    %v1537 = vrot.slane %v1532, 4
    %v1538 = vrot.slane %v1534, 4
    %v1543 = vadd.f32 %v1523, %v1535
    %v1544 = vadd.f32 %v1524, %v1536
    %v1545 = vadd.f32 %v1525, %v1537
    %v1546 = vadd.f32 %v1526, %v1538
    %s1547 = scalar_lea.vmem [#allocation2], 16
    %v1548 = vld [vmem:[%s1547] sm:$0xff]
    %v1549 = vld [vmem:[%s1547 + $0x8] sm:$0xff]
    %v1550 = vld [vmem:[%s1547 + $0x20] sm:$0xff]
    %v1551 = vld [vmem:[%s1547 + $0x28] sm:$0xff]
    %s1552 = scalar_lea.vmem %s1, 1024
    %v1553 = vld [vmem:[%s1552] sm:$0xff]
    %v1554 = vld [vmem:[%s1552 + $0x8] sm:$0xff]
    %v1555 = vld [vmem:[%s1552 + $0x10] sm:$0xff]
    %v1556 = vld [vmem:[%s1552 + $0x18] sm:$0xff]
    %v1557 = vld [vmem:[%s1552 + $0x20] sm:$0xff]
    %v1558 = vld [vmem:[%s1552 + $0x28] sm:$0xff]
    %v1559 = vld [vmem:[%s1552 + $0x30] sm:$0xff]
    %v1560 = vld [vmem:[%s1552 + $0x38] sm:$0xff]
    %v1561 = vld [vmem:[%s1552 + $0x40] sm:$0xff]
    %v1562 = vld [vmem:[%s1552 + $0x48] sm:$0xff]
    %v1563 = vld [vmem:[%s1552 + $0x50] sm:$0xff]
    %v1564 = vld [vmem:[%s1552 + $0x58] sm:$0xff]
    %v1565 = vld [vmem:[%s1552 + $0x60] sm:$0xff]
    %v1566 = vld [vmem:[%s1552 + $0x68] sm:$0xff]
    %v1567 = vld [vmem:[%s1552 + $0x70] sm:$0xff]
    %v1568 = vld [vmem:[%s1552 + $0x78] sm:$0xff]
    %v1569 = vld [vmem:[%s1552 + $0x80] sm:$0xff]
    %v1570 = vld [vmem:[%s1552 + $0x88] sm:$0xff]
    %v1571 = vld [vmem:[%s1552 + $0x90] sm:$0xff]
    %v1572 = vld [vmem:[%s1552 + $0x98] sm:$0xff]
    %v1573 = vld [vmem:[%s1552 + $0xa0] sm:$0xff]
    %v1574 = vld [vmem:[%s1552 + $0xa8] sm:$0xff]
    %v1575 = vld [vmem:[%s1552 + $0xb0] sm:$0xff]
    %v1576 = vld [vmem:[%s1552 + $0xb8] sm:$0xff]
    %v1577 = vld [vmem:[%s1552 + $0xc0] sm:$0xff]
    %v1578 = vld [vmem:[%s1552 + $0xc8] sm:$0xff]
    %v1579 = vld [vmem:[%s1552 + $0xd0] sm:$0xff]
    %v1580 = vld [vmem:[%s1552 + $0xd8] sm:$0xff]
    %v1581 = vld [vmem:[%s1552 + $0xe0] sm:$0xff]
    %v1582 = vld [vmem:[%s1552 + $0xe8] sm:$0xff]
    %v1583 = vld [vmem:[%s1552 + $0xf0] sm:$0xff]
    %v1584 = vld [vmem:[%s1552 + $0xf8] sm:$0xff]
    %v1585 = vld [vmem:[%s1552 + $0x100] sm:$0xff]
    %v1586 = vld [vmem:[%s1552 + $0x108] sm:$0xff]
    %v1587 = vld [vmem:[%s1552 + $0x110] sm:$0xff]
    %v1588 = vld [vmem:[%s1552 + $0x118] sm:$0xff]
    %v1589 = vld [vmem:[%s1552 + $0x120] sm:$0xff]
    %v1590 = vld [vmem:[%s1552 + $0x128] sm:$0xff]
    %v1591 = vld [vmem:[%s1552 + $0x130] sm:$0xff]
    %v1592 = vld [vmem:[%s1552 + $0x138] sm:$0xff]
    %v1593 = vld [vmem:[%s1552 + $0x140] sm:$0xff]
    %v1594 = vld [vmem:[%s1552 + $0x148] sm:$0xff]
    %v1595 = vld [vmem:[%s1552 + $0x150] sm:$0xff]
    %v1596 = vld [vmem:[%s1552 + $0x158] sm:$0xff]
    %v1597 = vld [vmem:[%s1552 + $0x160] sm:$0xff]
    %v1598 = vld [vmem:[%s1552 + $0x168] sm:$0xff]
    %v1599 = vld [vmem:[%s1552 + $0x170] sm:$0xff]
    %v1600 = vld [vmem:[%s1552 + $0x178] sm:$0xff]
    %v1601 = vld [vmem:[%s1552 + $0x180] sm:$0xff]
    %v1602 = vld [vmem:[%s1552 + $0x188] sm:$0xff]
    %v1603 = vld [vmem:[%s1552 + $0x190] sm:$0xff]
    %v1604 = vld [vmem:[%s1552 + $0x198] sm:$0xff]
    %v1605 = vld [vmem:[%s1552 + $0x1a0] sm:$0xff]
    %v1606 = vld [vmem:[%s1552 + $0x1a8] sm:$0xff]
    %v1607 = vld [vmem:[%s1552 + $0x1b0] sm:$0xff]
    %v1608 = vld [vmem:[%s1552 + $0x1b8] sm:$0xff]
    %v1609 = vld [vmem:[%s1552 + $0x1c0] sm:$0xff]
    %v1610 = vld [vmem:[%s1552 + $0x1c8] sm:$0xff]
    %v1611 = vld [vmem:[%s1552 + $0x1d0] sm:$0xff]
    %v1612 = vld [vmem:[%s1552 + $0x1d8] sm:$0xff]
    %v1613 = vld [vmem:[%s1552 + $0x1e0] sm:$0xff]
    %v1614 = vld [vmem:[%s1552 + $0x1e8] sm:$0xff]
    %v1615 = vld [vmem:[%s1552 + $0x1f0] sm:$0xff]
    %v1616 = vld [vmem:[%s1552 + $0x1f8] sm:$0xff]
    %v1621 = vcombine.low %v1548, %v1549
    %v1622 = vcombine.high %v1548, %v1549
    %v1623 = vcombine.low %v1550, %v1551
    %v1624 = vcombine.high %v1550, %v1551
    %v1626 = vunpack.c.l.s4 1983009808
    %v1627 = vunpack.c.0.s8 %v1626
    %v1628 = vlaneseq
    %v1629 = vshrl.u32 %v1628, 7
    %v1630 = vsub.s32 %v1627, %v1629
    %v1631 = vrot.slane %v1621, %v1630
    %v1633 = vunpack.c.l.s4 1983009808
    %v1634 = vunpack.c.0.s8 %v1633
    %v1635 = vlaneseq
    %v1636 = vshrl.u32 %v1635, 7
    %v1637 = vsub.s32 %v1634, %v1636
    %v1638 = vrot.slane %v1622, %v1637
    %v1640 = vunpack.c.l.s4 1983009808
    %v1641 = vunpack.c.0.s8 %v1640
    %v1642 = vlaneseq
    %v1643 = vshrl.u32 %v1642, 7
    %v1644 = vsub.s32 %v1641, %v1643
    %v1645 = vrot.slane %v1623, %v1644
    %v1647 = vunpack.c.l.s4 1983009808
    %v1648 = vunpack.c.0.s8 %v1647
    %v1649 = vlaneseq
    %v1650 = vshrl.u32 %v1649, 7
    %v1651 = vsub.s32 %v1648, %v1650
    %v1652 = vrot.slane %v1624, %v1651
    %v1653 = vcombine.low %v1631, %v1645
    %v1654 = vcombine.high %v1631, %v1645
    %v1655 = vcombine.low %v1638, %v1652
    %v1656 = vcombine.high %v1638, %v1652
    %v1725 = vunpack.c.l.b16 %v1553
    %v1726 = vunpack.c.h.b16 %v1553
    %v1727 = vunpack.c.l.b16 %v1554
    %v1728 = vunpack.c.h.b16 %v1554
    %v1729 = vunpack.c.l.b16 %v1555
    %v1730 = vunpack.c.h.b16 %v1555
    %v1731 = vunpack.c.l.b16 %v1556
    %v1732 = vunpack.c.h.b16 %v1556
    %v1733 = vunpack.c.l.b16 %v1557
    %v1734 = vunpack.c.h.b16 %v1557
    %v1735 = vunpack.c.l.b16 %v1558
    %v1736 = vunpack.c.h.b16 %v1558
    %v1737 = vunpack.c.l.b16 %v1559
    %v1738 = vunpack.c.h.b16 %v1559
    %v1739 = vunpack.c.l.b16 %v1560
    %v1740 = vunpack.c.h.b16 %v1560
    %v1741 = vunpack.c.l.b16 %v1561
    %v1742 = vunpack.c.h.b16 %v1561
    %v1743 = vunpack.c.l.b16 %v1562
    %v1744 = vunpack.c.h.b16 %v1562
    %v1745 = vunpack.c.l.b16 %v1563
    %v1746 = vunpack.c.h.b16 %v1563
    %v1747 = vunpack.c.l.b16 %v1564
    %v1748 = vunpack.c.h.b16 %v1564
    %v1749 = vunpack.c.l.b16 %v1565
    %v1750 = vunpack.c.h.b16 %v1565
    %v1751 = vunpack.c.l.b16 %v1566
    %v1752 = vunpack.c.h.b16 %v1566
    %v1753 = vunpack.c.l.b16 %v1567
    %v1754 = vunpack.c.h.b16 %v1567
    %v1755 = vunpack.c.l.b16 %v1568
    %v1756 = vunpack.c.h.b16 %v1568
    %v1757 = vunpack.c.l.b16 %v1569
    %v1758 = vunpack.c.h.b16 %v1569
    %v1759 = vunpack.c.l.b16 %v1570
    %v1760 = vunpack.c.h.b16 %v1570
    %v1761 = vunpack.c.l.b16 %v1571
    %v1762 = vunpack.c.h.b16 %v1571
    %v1763 = vunpack.c.l.b16 %v1572
    %v1764 = vunpack.c.h.b16 %v1572
    %v1765 = vunpack.c.l.b16 %v1573
    %v1766 = vunpack.c.h.b16 %v1573
    %v1767 = vunpack.c.l.b16 %v1574
    %v1768 = vunpack.c.h.b16 %v1574
    %v1769 = vunpack.c.l.b16 %v1575
    %v1770 = vunpack.c.h.b16 %v1575
    %v1771 = vunpack.c.l.b16 %v1576
    %v1772 = vunpack.c.h.b16 %v1576
    %v1773 = vunpack.c.l.b16 %v1577
    %v1774 = vunpack.c.h.b16 %v1577
    %v1775 = vunpack.c.l.b16 %v1578
    %v1776 = vunpack.c.h.b16 %v1578
    %v1777 = vunpack.c.l.b16 %v1579
    %v1778 = vunpack.c.h.b16 %v1579
    %v1779 = vunpack.c.l.b16 %v1580
    %v1780 = vunpack.c.h.b16 %v1580
    %v1781 = vunpack.c.l.b16 %v1581
    %v1782 = vunpack.c.h.b16 %v1581
    %v1783 = vunpack.c.l.b16 %v1582
    %v1784 = vunpack.c.h.b16 %v1582
    %v1785 = vunpack.c.l.b16 %v1583
    %v1786 = vunpack.c.h.b16 %v1583
    %v1787 = vunpack.c.l.b16 %v1584
    %v1788 = vunpack.c.h.b16 %v1584
    %v1789 = vunpack.c.l.b16 %v1585
    %v1790 = vunpack.c.h.b16 %v1585
    %v1791 = vunpack.c.l.b16 %v1586
    %v1792 = vunpack.c.h.b16 %v1586
    %v1793 = vunpack.c.l.b16 %v1587
    %v1794 = vunpack.c.h.b16 %v1587
    %v1795 = vunpack.c.l.b16 %v1588
    %v1796 = vunpack.c.h.b16 %v1588
    %v1797 = vunpack.c.l.b16 %v1589
    %v1798 = vunpack.c.h.b16 %v1589
    %v1799 = vunpack.c.l.b16 %v1590
    %v1800 = vunpack.c.h.b16 %v1590
    %v1801 = vunpack.c.l.b16 %v1591
    %v1802 = vunpack.c.h.b16 %v1591
    %v1803 = vunpack.c.l.b16 %v1592
    %v1804 = vunpack.c.h.b16 %v1592
    %v1805 = vunpack.c.l.b16 %v1593
    %v1806 = vunpack.c.h.b16 %v1593
    %v1807 = vunpack.c.l.b16 %v1594
    %v1808 = vunpack.c.h.b16 %v1594
    %v1809 = vunpack.c.l.b16 %v1595
    %v1810 = vunpack.c.h.b16 %v1595
    %v1811 = vunpack.c.l.b16 %v1596
    %v1812 = vunpack.c.h.b16 %v1596
    %v1813 = vunpack.c.l.b16 %v1597
    %v1814 = vunpack.c.h.b16 %v1597
    %v1815 = vunpack.c.l.b16 %v1598
    %v1816 = vunpack.c.h.b16 %v1598
    %v1817 = vunpack.c.l.b16 %v1599
    %v1818 = vunpack.c.h.b16 %v1599
    %v1819 = vunpack.c.l.b16 %v1600
    %v1820 = vunpack.c.h.b16 %v1600
    %v1821 = vunpack.c.l.b16 %v1601
    %v1822 = vunpack.c.h.b16 %v1601
    %v1823 = vunpack.c.l.b16 %v1602
    %v1824 = vunpack.c.h.b16 %v1602
    %v1825 = vunpack.c.l.b16 %v1603
    %v1826 = vunpack.c.h.b16 %v1603
    %v1827 = vunpack.c.l.b16 %v1604
    %v1828 = vunpack.c.h.b16 %v1604
    %v1829 = vunpack.c.l.b16 %v1605
    %v1830 = vunpack.c.h.b16 %v1605
    %v1831 = vunpack.c.l.b16 %v1606
    %v1832 = vunpack.c.h.b16 %v1606
    %v1833 = vunpack.c.l.b16 %v1607
    %v1834 = vunpack.c.h.b16 %v1607
    %v1835 = vunpack.c.l.b16 %v1608
    %v1836 = vunpack.c.h.b16 %v1608
    %v1837 = vunpack.c.l.b16 %v1609
    %v1838 = vunpack.c.h.b16 %v1609
    %v1839 = vunpack.c.l.b16 %v1610
    %v1840 = vunpack.c.h.b16 %v1610
    %v1841 = vunpack.c.l.b16 %v1611
    %v1842 = vunpack.c.h.b16 %v1611
    %v1843 = vunpack.c.l.b16 %v1612
    %v1844 = vunpack.c.h.b16 %v1612
    %v1845 = vunpack.c.l.b16 %v1613
    %v1846 = vunpack.c.h.b16 %v1613
    %v1847 = vunpack.c.l.b16 %v1614
    %v1848 = vunpack.c.h.b16 %v1614
    %v1849 = vunpack.c.l.b16 %v1615
    %v1850 = vunpack.c.h.b16 %v1615
    %v1851 = vunpack.c.l.b16 %v1616
    %v1852 = vunpack.c.h.b16 %v1616
    %v1853 = vpack.c.b16 %v1727, %v1725
    %v1854 = vpack.c.b16 %v1728, %v1726
    %v1855 = vpack.c.b16 %v1731, %v1729
    %v1856 = vpack.c.b16 %v1732, %v1730
    %v1857 = vpack.c.b16 %v1735, %v1733
    %v1858 = vpack.c.b16 %v1736, %v1734
    %v1859 = vpack.c.b16 %v1739, %v1737
    %v1860 = vpack.c.b16 %v1740, %v1738
    %v1861 = vpack.c.b16 %v1743, %v1741
    %v1862 = vpack.c.b16 %v1744, %v1742
    %v1863 = vpack.c.b16 %v1747, %v1745
    %v1864 = vpack.c.b16 %v1748, %v1746
    %v1865 = vpack.c.b16 %v1751, %v1749
    %v1866 = vpack.c.b16 %v1752, %v1750
    %v1867 = vpack.c.b16 %v1755, %v1753
    %v1868 = vpack.c.b16 %v1756, %v1754
    %v1869 = vpack.c.b16 %v1759, %v1757
    %v1870 = vpack.c.b16 %v1760, %v1758
    %v1871 = vpack.c.b16 %v1763, %v1761
    %v1872 = vpack.c.b16 %v1764, %v1762
    %v1873 = vpack.c.b16 %v1767, %v1765
    %v1874 = vpack.c.b16 %v1768, %v1766
    %v1875 = vpack.c.b16 %v1771, %v1769
    %v1876 = vpack.c.b16 %v1772, %v1770
    %v1877 = vpack.c.b16 %v1775, %v1773
    %v1878 = vpack.c.b16 %v1776, %v1774
    %v1879 = vpack.c.b16 %v1779, %v1777
    %v1880 = vpack.c.b16 %v1780, %v1778
    %v1881 = vpack.c.b16 %v1783, %v1781
    %v1882 = vpack.c.b16 %v1784, %v1782
    %v1883 = vpack.c.b16 %v1787, %v1785
    %v1884 = vpack.c.b16 %v1788, %v1786
    %v1885 = vpack.c.b16 %v1791, %v1789
    %v1886 = vpack.c.b16 %v1792, %v1790
    %v1887 = vpack.c.b16 %v1795, %v1793
    %v1888 = vpack.c.b16 %v1796, %v1794
    %v1889 = vpack.c.b16 %v1799, %v1797
    %v1890 = vpack.c.b16 %v1800, %v1798
    %v1891 = vpack.c.b16 %v1803, %v1801
    %v1892 = vpack.c.b16 %v1804, %v1802
    %v1893 = vpack.c.b16 %v1807, %v1805
    %v1894 = vpack.c.b16 %v1808, %v1806
    %v1895 = vpack.c.b16 %v1811, %v1809
    %v1896 = vpack.c.b16 %v1812, %v1810
    %v1897 = vpack.c.b16 %v1815, %v1813
    %v1898 = vpack.c.b16 %v1816, %v1814
    %v1899 = vpack.c.b16 %v1819, %v1817
    %v1900 = vpack.c.b16 %v1820, %v1818
    %v1901 = vpack.c.b16 %v1823, %v1821
    %v1902 = vpack.c.b16 %v1824, %v1822
    %v1903 = vpack.c.b16 %v1827, %v1825
    %v1904 = vpack.c.b16 %v1828, %v1826
    %v1905 = vpack.c.b16 %v1831, %v1829
    %v1906 = vpack.c.b16 %v1832, %v1830
    %v1907 = vpack.c.b16 %v1835, %v1833
    %v1908 = vpack.c.b16 %v1836, %v1834
    %v1909 = vpack.c.b16 %v1839, %v1837
    %v1910 = vpack.c.b16 %v1840, %v1838
    %v1911 = vpack.c.b16 %v1843, %v1841
    %v1912 = vpack.c.b16 %v1844, %v1842
    %v1913 = vpack.c.b16 %v1847, %v1845
    %v1914 = vpack.c.b16 %v1848, %v1846
    %v1915 = vpack.c.b16 %v1851, %v1849
    %v1916 = vpack.c.b16 %v1852, %v1850
    %1981 = vmatprep.subr.bf16.mxu0 %v1854
    %1982 = vmatpush1.bf16.msra.mxu0 %v1853
    %1983 = vmatprep.subr.bf16.mxu0 %v1856
    %1984 = vmatpush1.bf16.msra.mxu0 %v1855
    %1985 = vmatprep.subr.bf16.mxu0 %v1858
    %1986 = vmatpush1.bf16.msra.mxu0 %v1857
    %1987 = vmatprep.subr.bf16.mxu0 %v1860
    %1988 = vmatpush1.bf16.msra.mxu0 %v1859
    %1989 = vmatprep.subr.bf16.mxu0 %v1862
    %1990 = vmatpush1.bf16.msra.mxu0 %v1861
    %1991 = vmatprep.subr.bf16.mxu0 %v1864
    %1992 = vmatpush1.bf16.msra.mxu0 %v1863
    %1993 = vmatprep.subr.bf16.mxu0 %v1866
    %1994 = vmatpush1.bf16.msra.mxu0 %v1865
    %1995 = vmatprep.subr.bf16.mxu0 %v1868
    %1996 = vmatpush1.bf16.msra.mxu0 %v1867
    %1997 = vmatprep.subr.bf16.mxu0 %v1870
    %1998 = vmatpush1.bf16.msra.mxu0 %v1869
    %1999 = vmatprep.subr.bf16.mxu0 %v1872
    %2000 = vmatpush1.bf16.msra.mxu0 %v1871
    %2001 = vmatprep.subr.bf16.mxu0 %v1874
    %2002 = vmatpush1.bf16.msra.mxu0 %v1873
    %2003 = vmatprep.subr.bf16.mxu0 %v1876
    %2004 = vmatpush1.bf16.msra.mxu0 %v1875
    %2005 = vmatprep.subr.bf16.mxu0 %v1878
    %2006 = vmatpush1.bf16.msra.mxu0 %v1877
    %2007 = vmatprep.subr.bf16.mxu0 %v1880
    %2008 = vmatpush1.bf16.msra.mxu0 %v1879
    %2009 = vmatprep.subr.bf16.mxu0 %v1882
    %2010 = vmatpush1.bf16.msra.mxu0 %v1881
    %2011 = vmatprep.subr.bf16.mxu0 %v1884
    %2012 = vmatpush1.bf16.msra.mxu0 %v1883
    %2013 = vmatprep.mubr.bf16.mxu0 %v1654
    %2014 = vmatmul.mubr.bf16.gmra.mrb[0].mxu0 %v1653
    %v2015 = vpop.f32.mrb[0].mxu0
    %v2016 = vadd.f32 0.0, %v2015
    %v2017 = vpop.f32.mrb[0].mxu0
    %v2018 = vadd.f32 0.0, %v2017
    %v2019 = vpop.f32.mrb[0].mxu0
    %v2020 = vadd.f32 0.0, %v2019
    %v2021 = vpop.f32.mrb[0].mxu0
    %v2022 = vadd.f32 0.0, %v2021
    %2023 = vdwg.mxu0
    %2024 = vmatprep.subr.bf16.mxu0 %v1886
    %2025 = vmatpush1.bf16.msra.mxu0 %v1885
    %2026 = vmatprep.subr.bf16.mxu0 %v1888
    %2027 = vmatpush1.bf16.msra.mxu0 %v1887
    %2028 = vmatprep.subr.bf16.mxu0 %v1890
    %2029 = vmatpush1.bf16.msra.mxu0 %v1889
    %2030 = vmatprep.subr.bf16.mxu0 %v1892
    %2031 = vmatpush1.bf16.msra.mxu0 %v1891
    %2032 = vmatprep.subr.bf16.mxu0 %v1894
    %2033 = vmatpush1.bf16.msra.mxu0 %v1893
    %2034 = vmatprep.subr.bf16.mxu0 %v1896
    %2035 = vmatpush1.bf16.msra.mxu0 %v1895
    %2036 = vmatprep.subr.bf16.mxu0 %v1898
    %2037 = vmatpush1.bf16.msra.mxu0 %v1897
    %2038 = vmatprep.subr.bf16.mxu0 %v1900
    %2039 = vmatpush1.bf16.msra.mxu0 %v1899
    %2040 = vmatprep.subr.bf16.mxu0 %v1902
    %2041 = vmatpush1.bf16.msra.mxu0 %v1901
    %2042 = vmatprep.subr.bf16.mxu0 %v1904
    %2043 = vmatpush1.bf16.msra.mxu0 %v1903
    %2044 = vmatprep.subr.bf16.mxu0 %v1906
    %2045 = vmatpush1.bf16.msra.mxu0 %v1905
    %2046 = vmatprep.subr.bf16.mxu0 %v1908
    %2047 = vmatpush1.bf16.msra.mxu0 %v1907
    %2048 = vmatprep.subr.bf16.mxu0 %v1910
    %2049 = vmatpush1.bf16.msra.mxu0 %v1909
    %2050 = vmatprep.subr.bf16.mxu0 %v1912
    %2051 = vmatpush1.bf16.msra.mxu0 %v1911
    %2052 = vmatprep.subr.bf16.mxu0 %v1914
    %2053 = vmatpush1.bf16.msra.mxu0 %v1913
    %2054 = vmatprep.subr.bf16.mxu0 %v1916
    %2055 = vmatpush1.bf16.msra.mxu0 %v1915
    %2056 = vmatprep.mubr.bf16.mxu0 %v1656
    %2057 = vmatmul.mubr.bf16.gmra.mrb[0].mxu0 %v1655
    %v2058 = vpop.f32.mrb[0].mxu0
    %v2059 = vadd.f32 %v2016, %v2058
    %v2060 = vpop.f32.mrb[0].mxu0
    %v2061 = vadd.f32 %v2018, %v2060
    %v2062 = vpop.f32.mrb[0].mxu0
    %v2063 = vadd.f32 %v2020, %v2062
    %v2064 = vpop.f32.mrb[0].mxu0
    %v2065 = vadd.f32 %v2022, %v2064
    %2066 = vdwg.mxu0
    %v2071 = vcombine.low %v2059, %v2061
    %v2072 = vcombine.high %v2059, %v2061
    %v2073 = vcombine.low %v2063, %v2065
    %v2074 = vcombine.high %v2063, %v2065
    %v2079 = vadd.f32 %v1543, %v2071
    %v2080 = vadd.f32 %v1544, %v2072
    %v2081 = vadd.f32 %v1545, %v2073
    %v2082 = vadd.f32 %v1546, %v2074
    %v2083 = vrot.slane %v2071, 5
    %v2084 = vrot.slane %v2083, 4
    %v2085 = vrot.slane %v2072, 5
    %v2086 = vrot.slane %v2085, 4
    %v2087 = vrot.slane %v2073, 5
    %v2088 = vrot.slane %v2087, 4
    %v2089 = vrot.slane %v2074, 5
    %v2090 = vrot.slane %v2089, 4
    %2091 = vrot.lane.b32.xlu0 %v2084, 64
    %v2092 = vpop.permute.xlu0 %2091
    %2093 = vrot.lane.b32.xlu0 %v2086, 64
    %v2094 = vpop.permute.xlu0 %2093
    %2095 = vrot.lane.b32.xlu0 %v2088, 64
    %v2096 = vpop.permute.xlu0 %2095
    %2097 = vrot.lane.b32.xlu0 %v2090, 64
    %v2098 = vpop.permute.xlu0 %2097
    %v2103 = vadd.f32 %v2079, %v2092
    %v2104 = vadd.f32 %v2080, %v2094
    %v2105 = vadd.f32 %v2081, %v2096
    %v2106 = vadd.f32 %v2082, %v2098
    %v2107 = vrot.slane %v2071, 6
    %v2108 = vrot.slane %v2107, 4
    %v2109 = vrot.slane %v2072, 6
    %v2110 = vrot.slane %v2109, 4
    %v2111 = vrot.slane %v2073, 6
    %v2112 = vrot.slane %v2111, 4
    %v2113 = vrot.slane %v2074, 6
    %v2114 = vrot.slane %v2113, 4
    %v2115 = vrot.slane %v2108, 4
    %v2116 = vrot.slane %v2110, 4
    %v2117 = vrot.slane %v2112, 4
    %v2118 = vrot.slane %v2114, 4
    %v2123 = vadd.f32 %v2103, %v2115
    %v2124 = vadd.f32 %v2104, %v2116
    %v2125 = vadd.f32 %v2105, %v2117
    %v2126 = vadd.f32 %v2106, %v2118
    %v2127 = vld [vmem:[%s2] sm:$0x1]
    %v2129 = vlaneseq
    %v2130 = vshrl.u32 %v2129, 7
    %v2131 = vsub.s32 0, %v2130
    %v2132 = vrot.slane %v2127, %v2131
    %v2134 = vadd.f32 %v2123, %v2132
    %v2135 = vadd.f32 %v2124, %v2132
    %v2136 = vadd.f32 %v2125, %v2132
    %v2137 = vadd.f32 %v2126, %v2132
    %v2138 = vmax.f32 %v2134, 0.0
    %v2139 = vmax.f32 %v2135, 0.0
    %v2140 = vmax.f32 %v2136, 0.0
    %v2141 = vmax.f32 %v2137, 0.0
    %vm2142 = vcmask 517120
    %2143 = vst.msk [vmem:[#allocation3] sm:$0x3] %vm2142, 0
    %2144 = vst.msk [vmem:[#allocation3 + $0x8] sm:$0x3] %vm2142, 0
    %s2145 = scalar_lea.vmem [#allocation3], 6
    %2146 = vst.msk [vmem:[%s2145] sm:$0x3] %vm2142, 0
    %2147 = vst.msk [vmem:[%s2145 + $0x8] sm:$0x3] %vm2142, 0
    %v2148 = vpack.c.bf16 %v2138, %v2138
    %v2149 = vpack.c.bf16 %v2139, %v2139
    %v2150 = vpack.c.bf16 %v2140, %v2140
    %v2151 = vpack.c.bf16 %v2141, %v2141
    %v2153 = vshrl.u32 %v2148, 16
    %v2155 = vrot.slane %v2153, 7
    %v2156 = vshll.u32 %v2148, 16
    %v2158 = vor.u32 %v2155, %v2156
    %v2160 = vshrl.u32 %v2149, 16
    %v2162 = vrot.slane %v2160, 7
    %v2163 = vshll.u32 %v2149, 16
    %v2165 = vor.u32 %v2162, %v2163
    %v2167 = vshrl.u32 %v2150, 16
    %v2169 = vrot.slane %v2167, 7
    %v2170 = vshll.u32 %v2150, 16
    %v2172 = vor.u32 %v2169, %v2170
    %v2174 = vshrl.u32 %v2151, 16
    %v2176 = vrot.slane %v2174, 7
    %v2177 = vshll.u32 %v2151, 16
    %v2179 = vor.u32 %v2176, %v2177
    %v2184 = vsel %vm261, 0, %v2158
    %v2185 = vsel %vm261, 0, %v2165
    %v2186 = vsel %vm261, 0, %v2172
    %v2187 = vsel %vm261, 0, %v2179
    %v2188 = vsel %vm280, %v2184, 0
    %v2189 = vsel %vm280, %v2185, 0
    %v2190 = vsel %vm280, %v2186, 0
    %v2191 = vsel %vm280, %v2187, 0
    %s2192 = scalar_lea.vmem [#allocation3], 2
    %2193 = vst.msk [vmem:[%s2192] sm:$0x3] %vm2142, %v2188
    %2194 = vst.msk [vmem:[%s2192 + $0x2] sm:$0x3] %vm2142, %v2189
    %2195 = vst.msk [vmem:[%s2192 + $0x8] sm:$0x3] %vm2142, %v2190
    %2196 = vst.msk [vmem:[%s2192 + $0xa] sm:$0x3] %vm2142, %v2191
    %v2197 = vld [vmem:[#allocation3] sm:$0x1]
    %v2198 = vld [vmem:[#allocation3 + $0x2] sm:$0x1]
    %v2199 = vld [vmem:[#allocation3 + $0x8] sm:$0x1]
    %v2200 = vld [vmem:[#allocation3 + $0xa] sm:$0x1]
    %v2201 = vld [vmem:[#allocation3] sm:$0x3]
    %v2202 = vld [vmem:[#allocation3 + $0x2] sm:$0x3]
    %v2203 = vld [vmem:[#allocation3 + $0x8] sm:$0x3]
    %v2204 = vld [vmem:[#allocation3 + $0xa] sm:$0x3]
    %v2205 = vld [vmem:[#allocation3] sm:$0x2]
    %v2206 = vld [vmem:[#allocation3 + $0x2] sm:$0x2]
    %v2207 = vld [vmem:[#allocation3 + $0x8] sm:$0x2]
    %v2208 = vld [vmem:[#allocation3 + $0xa] sm:$0x2]
    %v2209 = vld [vmem:[%s2192] sm:$0x1]
    %v2210 = vld [vmem:[%s2192 + $0x2] sm:$0x1]
    %v2211 = vld [vmem:[%s2192 + $0x8] sm:$0x1]
    %v2212 = vld [vmem:[%s2192 + $0xa] sm:$0x1]
    %v2213 = vld [vmem:[%s2192] sm:$0x3]
    %v2214 = vld [vmem:[%s2192 + $0x2] sm:$0x3]
    %v2215 = vld [vmem:[%s2192 + $0x8] sm:$0x3]
    %v2216 = vld [vmem:[%s2192 + $0xa] sm:$0x3]
    %v2217 = vld [vmem:[%s2192] sm:$0x2]
    %v2218 = vld [vmem:[%s2192 + $0x2] sm:$0x2]
    %v2219 = vld [vmem:[%s2192 + $0x8] sm:$0x2]
    %v2220 = vld [vmem:[%s2192 + $0xa] sm:$0x2]
    %s2221 = scalar_lea.vmem [#allocation3], 4
    %v2222 = vld [vmem:[%s2221] sm:$0x1]
    %v2223 = vld [vmem:[%s2221 + $0x2] sm:$0x1]
    %v2224 = vld [vmem:[%s2221 + $0x8] sm:$0x1]
    %v2225 = vld [vmem:[%s2221 + $0xa] sm:$0x1]
    %v2226 = vld [vmem:[%s2221] sm:$0x3]
    %v2227 = vld [vmem:[%s2221 + $0x2] sm:$0x3]
    %v2228 = vld [vmem:[%s2221 + $0x8] sm:$0x3]
    %v2229 = vld [vmem:[%s2221 + $0xa] sm:$0x3]
    %v2230 = vld [vmem:[%s2221] sm:$0x2]
    %v2231 = vld [vmem:[%s2221 + $0x2] sm:$0x2]
    %v2232 = vld [vmem:[%s2221 + $0x8] sm:$0x2]
    %v2233 = vld [vmem:[%s2221 + $0xa] sm:$0x2]
    %v2239 = vunpack.c.l.s4 1983009808
    %v2240 = vunpack.c.0.s8 %v2239
    %v2241 = vlaneseq
    %v2242 = vshrl.u32 %v2241, 7
    %v2243 = vsub.s32 %v2240, %v2242
    %v2244 = vrot.slane %v2201, %v2243
    %v2246 = vunpack.c.l.s4 1983009808
    %v2247 = vunpack.c.0.s8 %v2246
    %v2248 = vlaneseq
    %v2249 = vshrl.u32 %v2248, 7
    %v2250 = vsub.s32 %v2247, %v2249
    %v2251 = vrot.slane %v2202, %v2250
    %v2253 = vunpack.c.l.s4 1983009808
    %v2254 = vunpack.c.0.s8 %v2253
    %v2255 = vlaneseq
    %v2256 = vshrl.u32 %v2255, 7
    %v2257 = vsub.s32 %v2254, %v2256
    %v2258 = vrot.slane %v2203, %v2257
    %v2260 = vunpack.c.l.s4 1983009808
    %v2261 = vunpack.c.0.s8 %v2260
    %v2262 = vlaneseq
    %v2263 = vshrl.u32 %v2262, 7
    %v2264 = vsub.s32 %v2261, %v2263
    %v2265 = vrot.slane %v2204, %v2264
    %v2267 = vshrl.u32 %v2244, 16
    %v2269 = vshll.u32 %v2244, 16
    %v2271 = vrot.slane %v2269, 1
    %v2272 = vor.u32 %v2267, %v2271
    %v2274 = vshrl.u32 %v2251, 16
    %v2276 = vshll.u32 %v2251, 16
    %v2278 = vrot.slane %v2276, 1
    %v2279 = vor.u32 %v2274, %v2278
    %v2281 = vshrl.u32 %v2258, 16
    %v2283 = vshll.u32 %v2258, 16
    %v2285 = vrot.slane %v2283, 1
    %v2286 = vor.u32 %v2281, %v2285
    %v2288 = vshrl.u32 %v2265, 16
    %v2290 = vshll.u32 %v2265, 16
    %v2292 = vrot.slane %v2290, 1
    %v2293 = vor.u32 %v2288, %v2292
    %2294 = vrot.lane.b32.xlu0 %v2272, 64
    %v2295 = vpop.permute.xlu0 %2294
    %2296 = vrot.lane.b32.xlu0 %v2279, 64
    %v2297 = vpop.permute.xlu0 %2296
    %2298 = vrot.lane.b32.xlu0 %v2286, 64
    %v2299 = vpop.permute.xlu0 %2298
    %2300 = vrot.lane.b32.xlu0 %v2293, 64
    %v2301 = vpop.permute.xlu0 %2300
    %v2307 = vunpack.c.l.s4 1983009808
    %v2308 = vunpack.c.0.s8 %v2307
    %v2309 = vlaneseq
    %v2310 = vshrl.u32 %v2309, 7
    %v2311 = vsub.s32 %v2308, %v2310
    %v2312 = vrot.slane %v2205, %v2311
    %v2314 = vunpack.c.l.s4 1983009808
    %v2315 = vunpack.c.0.s8 %v2314
    %v2316 = vlaneseq
    %v2317 = vshrl.u32 %v2316, 7
    %v2318 = vsub.s32 %v2315, %v2317
    %v2319 = vrot.slane %v2206, %v2318
    %v2321 = vunpack.c.l.s4 1983009808
    %v2322 = vunpack.c.0.s8 %v2321
    %v2323 = vlaneseq
    %v2324 = vshrl.u32 %v2323, 7
    %v2325 = vsub.s32 %v2322, %v2324
    %v2326 = vrot.slane %v2207, %v2325
    %v2328 = vunpack.c.l.s4 1983009808
    %v2329 = vunpack.c.0.s8 %v2328
    %v2330 = vlaneseq
    %v2331 = vshrl.u32 %v2330, 7
    %v2332 = vsub.s32 %v2329, %v2331
    %v2333 = vrot.slane %v2208, %v2332
    %v2334 = vrot.slane %v2312, 1
    %v2335 = vrot.slane %v2319, 1
    %v2336 = vrot.slane %v2326, 1
    %v2337 = vrot.slane %v2333, 1
    %v2343 = vunpack.c.l.s4 1983009808
    %v2344 = vunpack.c.0.s8 %v2343
    %v2345 = vlaneseq
    %v2346 = vshrl.u32 %v2345, 7
    %v2347 = vsub.s32 %v2344, %v2346
    %v2348 = vrot.slane %v2209, %v2347
    %v2350 = vunpack.c.l.s4 1983009808
    %v2351 = vunpack.c.0.s8 %v2350
    %v2352 = vlaneseq
    %v2353 = vshrl.u32 %v2352, 7
    %v2354 = vsub.s32 %v2351, %v2353
    %v2355 = vrot.slane %v2210, %v2354
    %v2357 = vunpack.c.l.s4 1983009808
    %v2358 = vunpack.c.0.s8 %v2357
    %v2359 = vlaneseq
    %v2360 = vshrl.u32 %v2359, 7
    %v2361 = vsub.s32 %v2358, %v2360
    %v2362 = vrot.slane %v2211, %v2361
    %v2364 = vunpack.c.l.s4 1983009808
    %v2365 = vunpack.c.0.s8 %v2364
    %v2366 = vlaneseq
    %v2367 = vshrl.u32 %v2366, 7
    %v2368 = vsub.s32 %v2365, %v2367
    %v2369 = vrot.slane %v2212, %v2368
    %2370 = vrot.lane.b32.xlu0 %v2348, 64
    %v2371 = vpop.permute.xlu0 %2370
    %2372 = vrot.lane.b32.xlu0 %v2355, 64
    %v2373 = vpop.permute.xlu0 %2372
    %2374 = vrot.lane.b32.xlu0 %v2362, 64
    %v2375 = vpop.permute.xlu0 %2374
    %2376 = vrot.lane.b32.xlu0 %v2369, 64
    %v2377 = vpop.permute.xlu0 %2376
    %v2383 = vunpack.c.l.s4 1983009808
    %v2384 = vunpack.c.0.s8 %v2383
    %v2385 = vlaneseq
    %v2386 = vshrl.u32 %v2385, 7
    %v2387 = vsub.s32 %v2384, %v2386
    %v2388 = vrot.slane %v2213, %v2387
    %v2390 = vunpack.c.l.s4 1983009808
    %v2391 = vunpack.c.0.s8 %v2390
    %v2392 = vlaneseq
    %v2393 = vshrl.u32 %v2392, 7
    %v2394 = vsub.s32 %v2391, %v2393
    %v2395 = vrot.slane %v2214, %v2394
    %v2397 = vunpack.c.l.s4 1983009808
    %v2398 = vunpack.c.0.s8 %v2397
    %v2399 = vlaneseq
    %v2400 = vshrl.u32 %v2399, 7
    %v2401 = vsub.s32 %v2398, %v2400
    %v2402 = vrot.slane %v2215, %v2401
    %v2404 = vunpack.c.l.s4 1983009808
    %v2405 = vunpack.c.0.s8 %v2404
    %v2406 = vlaneseq
    %v2407 = vshrl.u32 %v2406, 7
    %v2408 = vsub.s32 %v2405, %v2407
    %v2409 = vrot.slane %v2216, %v2408
    %v2411 = vshrl.u32 %v2388, 16
    %v2413 = vshll.u32 %v2388, 16
    %v2415 = vrot.slane %v2413, 1
    %v2416 = vor.u32 %v2411, %v2415
    %v2418 = vshrl.u32 %v2395, 16
    %v2420 = vshll.u32 %v2395, 16
    %v2422 = vrot.slane %v2420, 1
    %v2423 = vor.u32 %v2418, %v2422
    %v2425 = vshrl.u32 %v2402, 16
    %v2427 = vshll.u32 %v2402, 16
    %v2429 = vrot.slane %v2427, 1
    %v2430 = vor.u32 %v2425, %v2429
    %v2432 = vshrl.u32 %v2409, 16
    %v2434 = vshll.u32 %v2409, 16
    %v2436 = vrot.slane %v2434, 1
    %v2437 = vor.u32 %v2432, %v2436
    %v2443 = vunpack.c.l.s4 1983009808
    %v2444 = vunpack.c.0.s8 %v2443
    %v2445 = vlaneseq
    %v2446 = vshrl.u32 %v2445, 7
    %v2447 = vsub.s32 %v2444, %v2446
    %v2448 = vrot.slane %v2217, %v2447
    %v2450 = vunpack.c.l.s4 1983009808
    %v2451 = vunpack.c.0.s8 %v2450
    %v2452 = vlaneseq
    %v2453 = vshrl.u32 %v2452, 7
    %v2454 = vsub.s32 %v2451, %v2453
    %v2455 = vrot.slane %v2218, %v2454
    %v2457 = vunpack.c.l.s4 1983009808
    %v2458 = vunpack.c.0.s8 %v2457
    %v2459 = vlaneseq
    %v2460 = vshrl.u32 %v2459, 7
    %v2461 = vsub.s32 %v2458, %v2460
    %v2462 = vrot.slane %v2219, %v2461
    %v2464 = vunpack.c.l.s4 1983009808
    %v2465 = vunpack.c.0.s8 %v2464
    %v2466 = vlaneseq
    %v2467 = vshrl.u32 %v2466, 7
    %v2468 = vsub.s32 %v2465, %v2467
    %v2469 = vrot.slane %v2220, %v2468
    %v2470 = vrot.slane %v2448, 1
    %v2471 = vrot.slane %v2455, 1
    %v2472 = vrot.slane %v2462, 1
    %v2473 = vrot.slane %v2469, 1
    %2474 = vrot.lane.b32.xlu0 %v2470, 64
    %v2475 = vpop.permute.xlu0 %2474
    %2476 = vrot.lane.b32.xlu0 %v2471, 64
    %v2477 = vpop.permute.xlu0 %2476
    %2478 = vrot.lane.b32.xlu0 %v2472, 64
    %v2479 = vpop.permute.xlu0 %2478
    %2480 = vrot.lane.b32.xlu0 %v2473, 64
    %v2481 = vpop.permute.xlu0 %2480
    %v2487 = vunpack.c.l.s4 1983009808
    %v2488 = vunpack.c.0.s8 %v2487
    %v2489 = vlaneseq
    %v2490 = vshrl.u32 %v2489, 7
    %v2491 = vsub.s32 %v2488, %v2490
    %v2492 = vrot.slane %v2226, %v2491
    %v2494 = vunpack.c.l.s4 1983009808
    %v2495 = vunpack.c.0.s8 %v2494
    %v2496 = vlaneseq
    %v2497 = vshrl.u32 %v2496, 7
    %v2498 = vsub.s32 %v2495, %v2497
    %v2499 = vrot.slane %v2227, %v2498
    %v2501 = vunpack.c.l.s4 1983009808
    %v2502 = vunpack.c.0.s8 %v2501
    %v2503 = vlaneseq
    %v2504 = vshrl.u32 %v2503, 7
    %v2505 = vsub.s32 %v2502, %v2504
    %v2506 = vrot.slane %v2228, %v2505
    %v2508 = vunpack.c.l.s4 1983009808
    %v2509 = vunpack.c.0.s8 %v2508
    %v2510 = vlaneseq
    %v2511 = vshrl.u32 %v2510, 7
    %v2512 = vsub.s32 %v2509, %v2511
    %v2513 = vrot.slane %v2229, %v2512
    %v2515 = vshrl.u32 %v2492, 16
    %v2517 = vshll.u32 %v2492, 16
    %v2519 = vrot.slane %v2517, 1
    %v2520 = vor.u32 %v2515, %v2519
    %v2522 = vshrl.u32 %v2499, 16
    %v2524 = vshll.u32 %v2499, 16
    %v2526 = vrot.slane %v2524, 1
    %v2527 = vor.u32 %v2522, %v2526
    %v2529 = vshrl.u32 %v2506, 16
    %v2531 = vshll.u32 %v2506, 16
    %v2533 = vrot.slane %v2531, 1
    %v2534 = vor.u32 %v2529, %v2533
    %v2536 = vshrl.u32 %v2513, 16
    %v2538 = vshll.u32 %v2513, 16
    %v2540 = vrot.slane %v2538, 1
    %v2541 = vor.u32 %v2536, %v2540
    %2542 = vrot.lane.b32.xlu0 %v2520, 64
    %v2543 = vpop.permute.xlu0 %2542
    %2544 = vrot.lane.b32.xlu0 %v2527, 64
    %v2545 = vpop.permute.xlu0 %2544
    %2546 = vrot.lane.b32.xlu0 %v2534, 64
    %v2547 = vpop.permute.xlu0 %2546
    %2548 = vrot.lane.b32.xlu0 %v2541, 64
    %v2549 = vpop.permute.xlu0 %2548
    %v2555 = vunpack.c.l.s4 1983009808
    %v2556 = vunpack.c.0.s8 %v2555
    %v2557 = vlaneseq
    %v2558 = vshrl.u32 %v2557, 7
    %v2559 = vsub.s32 %v2556, %v2558
    %v2560 = vrot.slane %v2230, %v2559
    %v2562 = vunpack.c.l.s4 1983009808
    %v2563 = vunpack.c.0.s8 %v2562
    %v2564 = vlaneseq
    %v2565 = vshrl.u32 %v2564, 7
    %v2566 = vsub.s32 %v2563, %v2565
    %v2567 = vrot.slane %v2231, %v2566
    %v2569 = vunpack.c.l.s4 1983009808
    %v2570 = vunpack.c.0.s8 %v2569
    %v2571 = vlaneseq
    %v2572 = vshrl.u32 %v2571, 7
    %v2573 = vsub.s32 %v2570, %v2572
    %v2574 = vrot.slane %v2232, %v2573
    %v2576 = vunpack.c.l.s4 1983009808
    %v2577 = vunpack.c.0.s8 %v2576
    %v2578 = vlaneseq
    %v2579 = vshrl.u32 %v2578, 7
    %v2580 = vsub.s32 %v2577, %v2579
    %v2581 = vrot.slane %v2233, %v2580
    %v2582 = vrot.slane %v2560, 1
    %v2583 = vrot.slane %v2567, 1
    %v2584 = vrot.slane %v2574, 1
    %v2585 = vrot.slane %v2581, 1
    %vm2586 = vcmask 523264
    %v2589 = vsel %vm2586, %v2197, %v2295
    %v2592 = vsel %vm2586, %v2198, %v2297
    %v2595 = vsel %vm2586, %v2199, %v2299
    %v2598 = vsel %vm2586, %v2200, %v2301
    %v2601 = vsel %vm2586, %v2334, %v2371
    %v2604 = vsel %vm2586, %v2335, %v2373
    %v2607 = vsel %vm2586, %v2336, %v2375
    %v2610 = vsel %vm2586, %v2337, %v2377
    %v2613 = vsel %vm2586, %v2416, %v2475
    %v2616 = vsel %vm2586, %v2423, %v2477
    %v2619 = vsel %vm2586, %v2430, %v2479
    %v2622 = vsel %vm2586, %v2437, %v2481
    %v2625 = vsel %vm2586, %v2222, %v2543
    %v2628 = vsel %vm2586, %v2223, %v2545
    %v2631 = vsel %vm2586, %v2224, %v2547
    %v2634 = vsel %vm2586, %v2225, %v2549
    %v2651 = vcombine.low %v2589, %v2601
    %v2652 = vcombine.low %v2613, %v2625
    %v2654 = vunpack.c.l.s4 1966171168
    %v2655 = vunpack.c.0.s8 %v2654
    %v2656 = vlaneseq
    %v2657 = vshrl.u32 %v2656, 7
    %v2658 = vsub.s32 %v2655, %v2657
    %v2659 = vrot.slane %v2651, %v2658
    %v2661 = vunpack.c.l.s4 1966171168
    %v2662 = vunpack.c.0.s8 %v2661
    %v2663 = vlaneseq
    %v2664 = vshrl.u32 %v2663, 7
    %v2665 = vsub.s32 %v2662, %v2664
    %v2666 = vrot.slane %v2652, %v2665
    %v2668 = vunpack.c.l.s4 1966171168
    %v2669 = vunpack.c.0.s8 %v2668
    %v2670 = vlaneseq
    %v2671 = vshrl.u32 %v2670, 7
    %v2672 = vsub.s32 %v2669, %v2671
    %v2673 = vrot.slane %v2582, %v2672
    %v2674 = vcombine.low %v2659, %v2666
    %v2676 = vunpack.c.l.s4 1966171168
    %v2677 = vunpack.c.0.s8 %v2676
    %v2678 = vlaneseq
    %v2679 = vshrl.u32 %v2678, 7
    %v2680 = vsub.s32 %v2677, %v2679
    %v2681 = vrot.slane %v2674, %v2680
    %v2683 = vunpack.c.l.s4 1966171168
    %v2684 = vunpack.c.0.s8 %v2683
    %v2685 = vlaneseq
    %v2686 = vshrl.u32 %v2685, 7
    %v2687 = vsub.s32 %v2684, %v2686
    %v2688 = vrot.slane %v2673, %v2687
    %v2689 = vcombine.low %v2681, %v2688
    %v2690 = vcombine.low %v2592, %v2604
    %v2691 = vcombine.low %v2616, %v2628
    %v2693 = vunpack.c.l.s4 1966171168
    %v2694 = vunpack.c.0.s8 %v2693
    %v2695 = vlaneseq
    %v2696 = vshrl.u32 %v2695, 7
    %v2697 = vsub.s32 %v2694, %v2696
    %v2698 = vrot.slane %v2690, %v2697
    %v2700 = vunpack.c.l.s4 1966171168
    %v2701 = vunpack.c.0.s8 %v2700
    %v2702 = vlaneseq
    %v2703 = vshrl.u32 %v2702, 7
    %v2704 = vsub.s32 %v2701, %v2703
    %v2705 = vrot.slane %v2691, %v2704
    %v2707 = vunpack.c.l.s4 1966171168
    %v2708 = vunpack.c.0.s8 %v2707
    %v2709 = vlaneseq
    %v2710 = vshrl.u32 %v2709, 7
    %v2711 = vsub.s32 %v2708, %v2710
    %v2712 = vrot.slane %v2583, %v2711
    %v2713 = vcombine.low %v2698, %v2705
    %v2715 = vunpack.c.l.s4 1966171168
    %v2716 = vunpack.c.0.s8 %v2715
    %v2717 = vlaneseq
    %v2718 = vshrl.u32 %v2717, 7
    %v2719 = vsub.s32 %v2716, %v2718
    %v2720 = vrot.slane %v2713, %v2719
    %v2722 = vunpack.c.l.s4 1966171168
    %v2723 = vunpack.c.0.s8 %v2722
    %v2724 = vlaneseq
    %v2725 = vshrl.u32 %v2724, 7
    %v2726 = vsub.s32 %v2723, %v2725
    %v2727 = vrot.slane %v2712, %v2726
    %v2728 = vcombine.low %v2720, %v2727
    %v2729 = vcombine.low %v2595, %v2607
    %v2730 = vcombine.low %v2619, %v2631
    %v2732 = vunpack.c.l.s4 1966171168
    %v2733 = vunpack.c.0.s8 %v2732
    %v2734 = vlaneseq
    %v2735 = vshrl.u32 %v2734, 7
    %v2736 = vsub.s32 %v2733, %v2735
    %v2737 = vrot.slane %v2729, %v2736
    %v2739 = vunpack.c.l.s4 1966171168
    %v2740 = vunpack.c.0.s8 %v2739
    %v2741 = vlaneseq
    %v2742 = vshrl.u32 %v2741, 7
    %v2743 = vsub.s32 %v2740, %v2742
    %v2744 = vrot.slane %v2730, %v2743
    %v2746 = vunpack.c.l.s4 1966171168
    %v2747 = vunpack.c.0.s8 %v2746
    %v2748 = vlaneseq
    %v2749 = vshrl.u32 %v2748, 7
    %v2750 = vsub.s32 %v2747, %v2749
    %v2751 = vrot.slane %v2584, %v2750
    %v2752 = vcombine.low %v2737, %v2744
    %v2754 = vunpack.c.l.s4 1966171168
    %v2755 = vunpack.c.0.s8 %v2754
    %v2756 = vlaneseq
    %v2757 = vshrl.u32 %v2756, 7
    %v2758 = vsub.s32 %v2755, %v2757
    %v2759 = vrot.slane %v2752, %v2758
    %v2761 = vunpack.c.l.s4 1966171168
    %v2762 = vunpack.c.0.s8 %v2761
    %v2763 = vlaneseq
    %v2764 = vshrl.u32 %v2763, 7
    %v2765 = vsub.s32 %v2762, %v2764
    %v2766 = vrot.slane %v2751, %v2765
    %v2767 = vcombine.low %v2759, %v2766
    %v2768 = vcombine.low %v2598, %v2610
    %v2769 = vcombine.low %v2622, %v2634
    %v2771 = vunpack.c.l.s4 1966171168
    %v2772 = vunpack.c.0.s8 %v2771
    %v2773 = vlaneseq
    %v2774 = vshrl.u32 %v2773, 7
    %v2775 = vsub.s32 %v2772, %v2774
    %v2776 = vrot.slane %v2768, %v2775
    %v2778 = vunpack.c.l.s4 1966171168
    %v2779 = vunpack.c.0.s8 %v2778
    %v2780 = vlaneseq
    %v2781 = vshrl.u32 %v2780, 7
    %v2782 = vsub.s32 %v2779, %v2781
    %v2783 = vrot.slane %v2769, %v2782
    %v2785 = vunpack.c.l.s4 1966171168
    %v2786 = vunpack.c.0.s8 %v2785
    %v2787 = vlaneseq
    %v2788 = vshrl.u32 %v2787, 7
    %v2789 = vsub.s32 %v2786, %v2788
    %v2790 = vrot.slane %v2585, %v2789
    %v2791 = vcombine.low %v2776, %v2783
    %v2793 = vunpack.c.l.s4 1966171168
    %v2794 = vunpack.c.0.s8 %v2793
    %v2795 = vlaneseq
    %v2796 = vshrl.u32 %v2795, 7
    %v2797 = vsub.s32 %v2794, %v2796
    %v2798 = vrot.slane %v2791, %v2797
    %v2800 = vunpack.c.l.s4 1966171168
    %v2801 = vunpack.c.0.s8 %v2800
    %v2802 = vlaneseq
    %v2803 = vshrl.u32 %v2802, 7
    %v2804 = vsub.s32 %v2801, %v2803
    %v2805 = vrot.slane %v2790, %v2804
    %v2806 = vcombine.low %v2798, %v2805
    %v2807 = vld [vmem:[%s3] sm:$0xf]
    %v2808 = vld [vmem:[%s3 + $0x4] sm:$0xf]
    %v2809 = vld [vmem:[%s3 + $0x8] sm:$0xf]
    %v2810 = vld [vmem:[%s3 + $0xc] sm:$0xf]
    %v2811 = vld [vmem:[%s3 + $0x10] sm:$0xf]
    %v2812 = vld [vmem:[%s3 + $0x14] sm:$0xf]
    %v2813 = vld [vmem:[%s3 + $0x18] sm:$0xf]
    %v2814 = vld [vmem:[%s3 + $0x1c] sm:$0xf]
    %v2815 = vld [vmem:[%s3 + $0x20] sm:$0xf]
    %v2816 = vld [vmem:[%s3 + $0x24] sm:$0xf]
    %v2817 = vld [vmem:[%s3 + $0x28] sm:$0xf]
    %v2818 = vld [vmem:[%s3 + $0x2c] sm:$0xf]
    %v2819 = vld [vmem:[%s3 + $0x30] sm:$0xf]
    %v2820 = vld [vmem:[%s3 + $0x34] sm:$0xf]
    %v2821 = vld [vmem:[%s3 + $0x38] sm:$0xf]
    %v2822 = vld [vmem:[%s3 + $0x3c] sm:$0xf]
    %v2823 = vld [vmem:[%s3 + $0x40] sm:$0xf]
    %v2824 = vld [vmem:[%s3 + $0x44] sm:$0xf]
    %v2825 = vld [vmem:[%s3 + $0x48] sm:$0xf]
    %v2826 = vld [vmem:[%s3 + $0x4c] sm:$0xf]
    %v2827 = vld [vmem:[%s3 + $0x50] sm:$0xf]
    %v2828 = vld [vmem:[%s3 + $0x54] sm:$0xf]
    %v2829 = vld [vmem:[%s3 + $0x58] sm:$0xf]
    %v2830 = vld [vmem:[%s3 + $0x5c] sm:$0xf]
    %v2831 = vld [vmem:[%s3 + $0x60] sm:$0xf]
    %v2832 = vld [vmem:[%s3 + $0x64] sm:$0xf]
    %v2833 = vld [vmem:[%s3 + $0x68] sm:$0xf]
    %v2834 = vld [vmem:[%s3 + $0x6c] sm:$0xf]
    %v2835 = vld [vmem:[%s3 + $0x70] sm:$0xf]
    %v2836 = vld [vmem:[%s3 + $0x74] sm:$0xf]
    %v2837 = vld [vmem:[%s3 + $0x78] sm:$0xf]
    %v2838 = vld [vmem:[%s3 + $0x7c] sm:$0xf]
    %v2839 = vld [vmem:[%s3 + $0x80] sm:$0xf]
    %v2840 = vld [vmem:[%s3 + $0x84] sm:$0xf]
    %v2841 = vld [vmem:[%s3 + $0x88] sm:$0xf]
    %v2842 = vld [vmem:[%s3 + $0x8c] sm:$0xf]
    %v2843 = vld [vmem:[%s3 + $0x90] sm:$0xf]
    %v2844 = vld [vmem:[%s3 + $0x94] sm:$0xf]
    %v2845 = vld [vmem:[%s3 + $0x98] sm:$0xf]
    %v2846 = vld [vmem:[%s3 + $0x9c] sm:$0xf]
    %v2847 = vld [vmem:[%s3 + $0xa0] sm:$0xf]
    %v2848 = vld [vmem:[%s3 + $0xa4] sm:$0xf]
    %v2849 = vld [vmem:[%s3 + $0xa8] sm:$0xf]
    %v2850 = vld [vmem:[%s3 + $0xac] sm:$0xf]
    %v2851 = vld [vmem:[%s3 + $0xb0] sm:$0xf]
    %v2852 = vld [vmem:[%s3 + $0xb4] sm:$0xf]
    %v2853 = vld [vmem:[%s3 + $0xb8] sm:$0xf]
    %v2854 = vld [vmem:[%s3 + $0xbc] sm:$0xf]
    %v2855 = vld [vmem:[%s3 + $0xc0] sm:$0xf]
    %v2856 = vld [vmem:[%s3 + $0xc4] sm:$0xf]
    %v2857 = vld [vmem:[%s3 + $0xc8] sm:$0xf]
    %v2858 = vld [vmem:[%s3 + $0xcc] sm:$0xf]
    %v2859 = vld [vmem:[%s3 + $0xd0] sm:$0xf]
    %v2860 = vld [vmem:[%s3 + $0xd4] sm:$0xf]
    %v2861 = vld [vmem:[%s3 + $0xd8] sm:$0xf]
    %v2862 = vld [vmem:[%s3 + $0xdc] sm:$0xf]
    %v2863 = vld [vmem:[%s3 + $0xe0] sm:$0xf]
    %v2864 = vld [vmem:[%s3 + $0xe4] sm:$0xf]
    %v2865 = vld [vmem:[%s3 + $0xe8] sm:$0xf]
    %v2866 = vld [vmem:[%s3 + $0xec] sm:$0xf]
    %v2867 = vld [vmem:[%s3 + $0xf0] sm:$0xf]
    %v2868 = vld [vmem:[%s3 + $0xf4] sm:$0xf]
    %v2869 = vld [vmem:[%s3 + $0xf8] sm:$0xf]
    %v2870 = vld [vmem:[%s3 + $0xfc] sm:$0xf]
    %v2871 = vld [vmem:[%s3 + $0x100] sm:$0xf]
    %v2872 = vld [vmem:[%s3 + $0x104] sm:$0xf]
    %v2873 = vld [vmem:[%s3 + $0x108] sm:$0xf]
    %v2874 = vld [vmem:[%s3 + $0x10c] sm:$0xf]
    %v2875 = vld [vmem:[%s3 + $0x110] sm:$0xf]
    %v2876 = vld [vmem:[%s3 + $0x114] sm:$0xf]
    %v2877 = vld [vmem:[%s3 + $0x118] sm:$0xf]
    %v2878 = vld [vmem:[%s3 + $0x11c] sm:$0xf]
    %v2879 = vld [vmem:[%s4] sm:$0x1]
    %v2881 = vlaneseq
    %v2882 = vshrl.u32 %v2881, 7
    %v2883 = vsub.s32 0, %v2882
    %v2884 = vrot.slane %v2879, %v2883
    %v2886 = vcombine.low %v2689, %v2728
    %v2887 = vcombine.high %v2689, %v2728
    %v2888 = vcombine.low %v2767, %v2806
    %v2889 = vcombine.high %v2767, %v2806
    %v2891 = vunpack.c.l.s4 1966171168
    %v2892 = vunpack.c.0.s8 %v2891
    %v2893 = vlaneseq
    %v2894 = vshrl.u32 %v2893, 7
    %v2895 = vsub.s32 %v2892, %v2894
    %v2896 = vrot.slane %v2886, %v2895
    %v2898 = vunpack.c.l.s4 1966171168
    %v2899 = vunpack.c.0.s8 %v2898
    %v2900 = vlaneseq
    %v2901 = vshrl.u32 %v2900, 7
    %v2902 = vsub.s32 %v2899, %v2901
    %v2903 = vrot.slane %v2887, %v2902
    %v2905 = vunpack.c.l.s4 1966171168
    %v2906 = vunpack.c.0.s8 %v2905
    %v2907 = vlaneseq
    %v2908 = vshrl.u32 %v2907, 7
    %v2909 = vsub.s32 %v2906, %v2908
    %v2910 = vrot.slane %v2888, %v2909
    %v2912 = vunpack.c.l.s4 1966171168
    %v2913 = vunpack.c.0.s8 %v2912
    %v2914 = vlaneseq
    %v2915 = vshrl.u32 %v2914, 7
    %v2916 = vsub.s32 %v2913, %v2915
    %v2917 = vrot.slane %v2889, %v2916
    %v2918 = vcombine.low %v2896, %v2910
    %v2919 = vcombine.high %v2896, %v2910
    %v2920 = vcombine.low %v2903, %v2917
    %v2922 = vunpack.c.l.s4 1966171168
    %v2923 = vunpack.c.0.s8 %v2922
    %v2924 = vlaneseq
    %v2925 = vshrl.u32 %v2924, 7
    %v2926 = vsub.s32 %v2923, %v2925
    %v2927 = vrot.slane %v2918, %v2926
    %v2929 = vunpack.c.l.s4 1966171168
    %v2930 = vunpack.c.0.s8 %v2929
    %v2931 = vlaneseq
    %v2932 = vshrl.u32 %v2931, 7
    %v2933 = vsub.s32 %v2930, %v2932
    %v2934 = vrot.slane %v2920, %v2933
    %v2936 = vunpack.c.l.s4 1966171168
    %v2937 = vunpack.c.0.s8 %v2936
    %v2938 = vlaneseq
    %v2939 = vshrl.u32 %v2938, 7
    %v2940 = vsub.s32 %v2937, %v2939
    %v2941 = vrot.slane %v2919, %v2940
    %v2942 = vcombine.high %v2927, %v2927
    %v2943 = vcombine.high %v2941, %v2941
    %v3020 = vunpack.c.l.b16 %v2807
    %v3021 = vunpack.c.l.b16 %v2808
    %v3022 = vunpack.c.l.b16 %v2809
    %v3023 = vunpack.c.l.b16 %v2810
    %v3024 = vunpack.c.l.b16 %v2811
    %v3025 = vunpack.c.l.b16 %v2812
    %v3026 = vunpack.c.l.b16 %v2813
    %v3027 = vunpack.c.l.b16 %v2814
    %v3028 = vunpack.c.l.b16 %v2815
    %v3029 = vunpack.c.l.b16 %v2816
    %v3030 = vunpack.c.l.b16 %v2817
    %v3031 = vunpack.c.l.b16 %v2818
    %v3032 = vunpack.c.l.b16 %v2819
    %v3033 = vunpack.c.l.b16 %v2820
    %v3034 = vunpack.c.l.b16 %v2821
    %v3035 = vunpack.c.l.b16 %v2822
    %v3036 = vunpack.c.l.b16 %v2823
    %v3037 = vunpack.c.l.b16 %v2824
    %v3038 = vunpack.c.l.b16 %v2825
    %v3039 = vunpack.c.l.b16 %v2826
    %v3040 = vunpack.c.l.b16 %v2827
    %v3041 = vunpack.c.l.b16 %v2828
    %v3042 = vunpack.c.l.b16 %v2829
    %v3043 = vunpack.c.l.b16 %v2830
    %v3044 = vunpack.c.l.b16 %v2831
    %v3045 = vunpack.c.l.b16 %v2832
    %v3046 = vunpack.c.l.b16 %v2833
    %v3047 = vunpack.c.l.b16 %v2834
    %v3048 = vunpack.c.l.b16 %v2835
    %v3049 = vunpack.c.l.b16 %v2836
    %v3050 = vunpack.c.l.b16 %v2837
    %v3051 = vunpack.c.l.b16 %v2838
    %v3052 = vunpack.c.l.b16 %v2839
    %v3053 = vunpack.c.l.b16 %v2840
    %v3054 = vunpack.c.l.b16 %v2841
    %v3055 = vunpack.c.l.b16 %v2842
    %v3056 = vunpack.c.l.b16 %v2843
    %v3057 = vunpack.c.l.b16 %v2844
    %v3058 = vunpack.c.l.b16 %v2845
    %v3059 = vunpack.c.l.b16 %v2846
    %v3060 = vunpack.c.l.b16 %v2847
    %v3061 = vunpack.c.l.b16 %v2848
    %v3062 = vunpack.c.l.b16 %v2849
    %v3063 = vunpack.c.l.b16 %v2850
    %v3064 = vunpack.c.l.b16 %v2851
    %v3065 = vunpack.c.l.b16 %v2852
    %v3066 = vunpack.c.l.b16 %v2853
    %v3067 = vunpack.c.l.b16 %v2854
    %v3068 = vunpack.c.l.b16 %v2855
    %v3069 = vunpack.c.l.b16 %v2856
    %v3070 = vunpack.c.l.b16 %v2857
    %v3071 = vunpack.c.l.b16 %v2858
    %v3072 = vunpack.c.l.b16 %v2859
    %v3073 = vunpack.c.l.b16 %v2860
    %v3074 = vunpack.c.l.b16 %v2861
    %v3075 = vunpack.c.l.b16 %v2862
    %v3076 = vunpack.c.l.b16 %v2863
    %v3077 = vunpack.c.l.b16 %v2864
    %v3078 = vunpack.c.l.b16 %v2865
    %v3079 = vunpack.c.l.b16 %v2866
    %v3080 = vunpack.c.l.b16 %v2867
    %v3081 = vunpack.c.l.b16 %v2868
    %v3082 = vunpack.c.l.b16 %v2869
    %v3083 = vunpack.c.l.b16 %v2870
    %v3084 = vunpack.c.l.b16 %v2871
    %v3085 = vunpack.c.l.b16 %v2872
    %v3086 = vunpack.c.l.b16 %v2873
    %v3087 = vunpack.c.l.b16 %v2874
    %v3088 = vunpack.c.l.b16 %v2875
    %v3089 = vunpack.c.l.b16 %v2876
    %v3090 = vunpack.c.l.b16 %v2877
    %v3091 = vunpack.c.l.b16 %v2878
    %v3092 = vpack.c.b16 %v3021, %v3020
    %v3093 = vpack.c.b16 %v3023, %v3022
    %v3094 = vpack.c.b16 %v3025, %v3024
    %v3095 = vpack.c.b16 %v3027, %v3026
    %v3096 = vpack.c.b16 %v3029, %v3028
    %v3097 = vpack.c.b16 %v3031, %v3030
    %v3098 = vpack.c.b16 %v3033, %v3032
    %v3099 = vpack.c.b16 %v3035, %v3034
    %v3100 = vpack.c.b16 %v3037, %v3036
    %v3101 = vpack.c.b16 %v3039, %v3038
    %v3102 = vpack.c.b16 %v3041, %v3040
    %v3103 = vpack.c.b16 %v3043, %v3042
    %v3104 = vpack.c.b16 %v3045, %v3044
    %v3105 = vpack.c.b16 %v3047, %v3046
    %v3106 = vpack.c.b16 %v3049, %v3048
    %v3107 = vpack.c.b16 %v3051, %v3050
    %v3108 = vpack.c.b16 %v3053, %v3052
    %v3109 = vpack.c.b16 %v3055, %v3054
    %v3110 = vpack.c.b16 %v3057, %v3056
    %v3111 = vpack.c.b16 %v3059, %v3058
    %v3112 = vpack.c.b16 %v3061, %v3060
    %v3113 = vpack.c.b16 %v3063, %v3062
    %v3114 = vpack.c.b16 %v3065, %v3064
    %v3115 = vpack.c.b16 %v3067, %v3066
    %v3116 = vpack.c.b16 %v3069, %v3068
    %v3117 = vpack.c.b16 %v3071, %v3070
    %v3118 = vpack.c.b16 %v3073, %v3072
    %v3119 = vpack.c.b16 %v3075, %v3074
    %v3120 = vpack.c.b16 %v3077, %v3076
    %v3121 = vpack.c.b16 %v3079, %v3078
    %v3122 = vpack.c.b16 %v3081, %v3080
    %v3123 = vpack.c.b16 %v3083, %v3082
    %v3124 = vpack.c.b16 %v3085, %v3084
    %v3125 = vpack.c.b16 %v3087, %v3086
    %v3126 = vpack.c.b16 %v3089, %v3088
    %v3127 = vpack.c.b16 %v3091, %v3090
    %v3165 = vsel %vm2586, %v2934, 0
    %3167 = vmatprep.subr.bf16.mxu0 0
    %3168 = vmatpush1.bf16.msra.mxu0 %v3092
    %3169 = vmatprep.subr.bf16.mxu0 0
    %3170 = vmatpush1.bf16.msra.mxu0 %v3093
    %3171 = vmatprep.subr.bf16.mxu0 0
    %3172 = vmatpush1.bf16.msra.mxu0 %v3094
    %3173 = vmatprep.subr.bf16.mxu0 0
    %3174 = vmatpush1.bf16.msra.mxu0 %v3095
    %3175 = vmatprep.subr.bf16.mxu0 0
    %3176 = vmatpush1.bf16.msra.mxu0 %v3096
    %3177 = vmatprep.subr.bf16.mxu0 0
    %3178 = vmatpush1.bf16.msra.mxu0 %v3097
    %3179 = vmatprep.subr.bf16.mxu0 0
    %3180 = vmatpush1.bf16.msra.mxu0 %v3098
    %3181 = vmatprep.subr.bf16.mxu0 0
    %3182 = vmatpush1.bf16.msra.mxu0 %v3099
    %3183 = vmatprep.subr.bf16.mxu0 0
    %3184 = vmatpush1.bf16.msra.mxu0 %v3100
    %3185 = vmatprep.subr.bf16.mxu0 0
    %3186 = vmatpush1.bf16.msra.mxu0 %v3101
    %3187 = vmatprep.subr.bf16.mxu0 0
    %3188 = vmatpush1.bf16.msra.mxu0 %v3102
    %3189 = vmatprep.subr.bf16.mxu0 0
    %3190 = vmatpush1.bf16.msra.mxu0 %v3103
    %3191 = vmatprep.subr.bf16.mxu0 0
    %3192 = vmatpush1.bf16.msra.mxu0 %v3104
    %3193 = vmatprep.subr.bf16.mxu0 0
    %3194 = vmatpush1.bf16.msra.mxu0 %v3105
    %3195 = vmatprep.subr.bf16.mxu0 0
    %3196 = vmatpush1.bf16.msra.mxu0 %v3106
    %3197 = vmatprep.subr.bf16.mxu0 0
    %3198 = vmatpush1.bf16.msra.mxu0 %v3107
    %3199 = vmatprep.mubr.bf16.mxu0 %v2941
    %3200 = vmatmul.mubr.bf16.gmra.mrb[0].mxu0 %v2927
    %v3201 = vpop.f32.mrb[0].mxu0
    %v3202 = vadd.f32 %v2884, %v3201
    %v3203 = vpop.f32.mrb[0].mxu0
    %v3204 = vpop.f32.mrb[0].mxu0
    %v3205 = vpop.f32.mrb[0].mxu0
    %3206 = vdwg.mxu0
    %3207 = vmatprep.subr.bf16.mxu0 0
    %3208 = vmatpush1.bf16.msra.mxu0 %v3108
    %3209 = vmatprep.subr.bf16.mxu0 0
    %3210 = vmatpush1.bf16.msra.mxu0 %v3109
    %3211 = vmatprep.subr.bf16.mxu0 0
    %3212 = vmatpush1.bf16.msra.mxu0 %v3110
    %3213 = vmatprep.subr.bf16.mxu0 0
    %3214 = vmatpush1.bf16.msra.mxu0 %v3111
    %3215 = vmatprep.subr.bf16.mxu0 0
    %3216 = vmatpush1.bf16.msra.mxu0 %v3112
    %3217 = vmatprep.subr.bf16.mxu0 0
    %3218 = vmatpush1.bf16.msra.mxu0 %v3113
    %3219 = vmatprep.subr.bf16.mxu0 0
    %3220 = vmatpush1.bf16.msra.mxu0 %v3114
    %3221 = vmatprep.subr.bf16.mxu0 0
    %3222 = vmatpush1.bf16.msra.mxu0 %v3115
    %3223 = vmatprep.subr.bf16.mxu0 0
    %3224 = vmatpush1.bf16.msra.mxu0 %v3116
    %3225 = vmatprep.subr.bf16.mxu0 0
    %3226 = vmatpush1.bf16.msra.mxu0 %v3117
    %3227 = vmatprep.subr.bf16.mxu0 0
    %3228 = vmatpush1.bf16.msra.mxu0 %v3118
    %3229 = vmatprep.subr.bf16.mxu0 0
    %3230 = vmatpush1.bf16.msra.mxu0 %v3119
    %3231 = vmatprep.subr.bf16.mxu0 0
    %3232 = vmatpush1.bf16.msra.mxu0 %v3120
    %3233 = vmatprep.subr.bf16.mxu0 0
    %3234 = vmatpush1.bf16.msra.mxu0 %v3121
    %3235 = vmatprep.subr.bf16.mxu0 0
    %3236 = vmatpush1.bf16.msra.mxu0 %v3122
    %3237 = vmatprep.subr.bf16.mxu0 0
    %3238 = vmatpush1.bf16.msra.mxu0 %v3123
    %3239 = vmatprep.mubr.bf16.mxu0 %v2943
    %3240 = vmatmul.mubr.bf16.gmra.mrb[0].mxu0 %v2942
    %v3241 = vpop.f32.mrb[0].mxu0
    %v3242 = vadd.f32 %v3202, %v3241
    %v3243 = vpop.f32.mrb[0].mxu0
    %v3244 = vpop.f32.mrb[0].mxu0
    %v3245 = vpop.f32.mrb[0].mxu0
    %3246 = vdwg.mxu0
    %3247 = vmatprep.subr.bf16.mxu0 0
    %3248 = vmatpush1.bf16.msra.mxu0 %v3124
    %3249 = vmatprep.subr.bf16.mxu0 0
    %3250 = vmatpush1.bf16.msra.mxu0 %v3125
    %3251 = vmatprep.subr.bf16.mxu0 0
    %3252 = vmatpush1.bf16.msra.mxu0 %v3126
    %3253 = vmatprep.subr.bf16.mxu0 0
    %3254 = vmatpush1.bf16.msra.mxu0 %v3127
    %3255 = vmatprep.subr.bf16.mxu0 0
    %3256 = vmatpush1.bf16.msra.mxu0 0
    %3257 = vmatprep.subr.bf16.mxu0 0
    %3258 = vmatpush1.bf16.msra.mxu0 0
    %3259 = vmatprep.subr.bf16.mxu0 0
    %3260 = vmatpush1.bf16.msra.mxu0 0
    %3261 = vmatprep.subr.bf16.mxu0 0
    %3262 = vmatpush1.bf16.msra.mxu0 0
    %3263 = vmatprep.subr.bf16.mxu0 0
    %3264 = vmatpush1.bf16.msra.mxu0 0
    %3265 = vmatprep.subr.bf16.mxu0 0
    %3266 = vmatpush1.bf16.msra.mxu0 0
    %3267 = vmatprep.subr.bf16.mxu0 0
    %3268 = vmatpush1.bf16.msra.mxu0 0
    %3269 = vmatprep.subr.bf16.mxu0 0
    %3270 = vmatpush1.bf16.msra.mxu0 0
    %3271 = vmatprep.subr.bf16.mxu0 0
    %3272 = vmatpush1.bf16.msra.mxu0 0
    %3273 = vmatprep.subr.bf16.mxu0 0
    %3274 = vmatpush1.bf16.msra.mxu0 0
    %3275 = vmatprep.subr.bf16.mxu0 0
    %3276 = vmatpush1.bf16.msra.mxu0 0
    %3277 = vmatprep.subr.bf16.mxu0 0
    %3278 = vmatpush1.bf16.msra.mxu0 0
    %3279 = vmatprep.mubr.bf16.mxu0 0
    %3280 = vmatmul.mubr.bf16.gmra.mrb[0].mxu0 %v3165
    %v3281 = vpop.f32.mrb[0].mxu0
    %v3282 = vadd.f32 %v3242, %v3281
    %v3283 = vpop.f32.mrb[0].mxu0
    %v3284 = vpop.f32.mrb[0].mxu0
    %v3285 = vpop.f32.mrb[0].mxu0
    %3286 = vdwg.mxu0
    %v3287 = vmax.f32 %v3282, 0.0
    %v3289 = vcombine.high %v3287, %v3287
    %v3291 = vunpack.c.l.s4 1983009808
    %v3292 = vunpack.c.0.s8 %v3291
    %v3293 = vlaneseq
    %v3294 = vshrl.u32 %v3293, 7
    %v3295 = vsub.s32 %v3292, %v3294
    %v3296 = vrot.slane %v3287, %v3295
    %v3298 = vunpack.c.l.s4 1983009808
    %v3299 = vunpack.c.0.s8 %v3298
    %v3300 = vlaneseq
    %v3301 = vshrl.u32 %v3300, 7
    %v3302 = vsub.s32 %v3299, %v3301
    %v3303 = vrot.slane %v3289, %v3302
    %v3304 = vcombine.high %v3296, %v3296
    %v3305 = vcombine.high %v3303, %v3303
    %v3310 = vpack.c.bf16 %v3296, %v3296
    %v3311 = vpack.c.bf16 %v3304, %v3304
    %v3312 = vpack.c.bf16 %v3303, %v3303
    %v3313 = vpack.c.bf16 %v3305, %v3305
    %vm3314 = vcmask 516096
    %3315 = vst.msk [vmem:[#allocation4] sm:$0x1] %vm3314, %v3310
    %3316 = vst.msk [vmem:[#allocation4 + $0x1] sm:$0x1] %vm3314, %v3311
    %3317 = vst.msk [vmem:[#allocation4 + $0x2] sm:$0x1] %vm3314, %v3312
    %3318 = vst.msk [vmem:[#allocation4 + $0x3] sm:$0x1] %vm3314, %v3313
    // Predicated region
    $region22: #{tpu_custom_call.1} parent=1 // pred_check
      _
    $region23: #{tpu_custom_call.1} parent=1 // pred_check_branch
      %3320 = sbr.rel (0) target = $region25
    $region24: #{tpu_custom_call.1} parent=1 // pred_region
      %s3322 = ssub.s32 64, 64
      %3323 = vsyncadd [#allocation5], %s3322
      %s3324 = sshll.u32 [#allocation4], 4
      %s3325 = int_to_ptr.vmem [resolvable:$true] %s3324
      %3330 = dma.vmem_to_hbm [thread:$0]  %s3325, 64, %s5, [#allocation5], 16, 16, 1
    $region25: #{tpu_custom_call.1} parent=1 // pred_fallthru
      _
    // Predicated region
    $region26: #{tpu_custom_call.1} parent=1 // pred_check
      _
    $region27: #{tpu_custom_call.1} parent=1 // pred_check_branch
      %3332 = sbr.rel (0) target = $region29
    $region28: #{tpu_custom_call.1} parent=1 // pred_region
      %3333 = dma.done [#allocation5], 64
    $region29: #{tpu_custom_call.1} parent=1 // pred_fallthru
      _
    %3334 = vsyncpa [#allocation5], 1

</llo_original>
